<compile_context>
chip_gen: v7x
topology: tpu7x:2x2x1
jax: 0.10.0
libtpu: 0.0.40
codegen_flags: <defaults>
</compile_context>

<pallas_src>
import jax
import jax.numpy as jnp
from jax.experimental import pallas as pl
from jax.experimental.pallas import tpu as pltpu


def _round_up(a: int, b: int) -> int:
    return (a + b - 1) // b * b


def _vmem_capacity_bytes() -> int:
    """Physical per-core VMEM; conservative 64 MiB (v7x floor) if unqueryable."""
    try:
        return int(pltpu.get_tpu_info().vmem_capacity_bytes)
    except Exception:
        return 64 << 20


# ----------------------------------------------------------------------------- kernels
def ffn_resident_kernel(x_ref, w1_ref, b1_ref, w2_ref, b2_ref, o_ref):
    """Weights fully VMEM-resident: both matmuls fused per x tile, no scratch."""
    h = jnp.dot(x_ref[...], w1_ref[...], preferred_element_type=jnp.float32)
    h = h + b1_ref[...].astype(jnp.float32)
    # Exact erf GELU in f32 (matches torch nn.GELU() default).
    h = 0.5 * h * (1.0 + jax.lax.erf(h * 0.7071067811865476))
    # Dropout(p=0.0) is the identity -> no-op.
    y = jnp.dot(h.astype(w2_ref.dtype), w2_ref[...], preferred_element_type=jnp.float32)
    o_ref[...] = (y + b2_ref[...].astype(jnp.float32)).astype(o_ref.dtype)


def ffn_streaming_kernel(x_ref, w1_ref, b1_ref, w2_ref, b2_ref, o_ref, acc_ref):
    """H-tiled weight streaming: f32 accumulator over the hidden (reduction) axis."""
    k = pl.program_id(1)

    @pl.when(k == 0)
    def _init():
        acc_ref[...] = jnp.zeros_like(acc_ref)

    h = jnp.dot(x_ref[...], w1_ref[...], preferred_element_type=jnp.float32)
    h = h + b1_ref[...].astype(jnp.float32)
    h = 0.5 * h * (1.0 + jax.lax.erf(h * 0.7071067811865476))
    # Dropout(p=0.0) is the identity.
    acc_ref[...] += jnp.dot(h.astype(w2_ref.dtype), w2_ref[...],
                            preferred_element_type=jnp.float32)

    @pl.when(k == pl.num_programs(1) - 1)
    def _finalize():
        o_ref[...] = (acc_ref[...] + b2_ref[...].astype(jnp.float32)).astype(o_ref.dtype)


# ----------------------------------------------------------------------------- wrapper
def _vmem_estimate(tm, th, D, x_bytes, w_bytes, *, weight_bufs, with_acc):
    est = 2 * tm * D * x_bytes                                   # x tile, 2-deep
    est += 2 * tm * D * x_bytes                                  # out tile, 2-deep
    est += weight_bufs * (D * th + th * D + th + D) * w_bytes    # w1, w2, b1, b2 tiles
    est += tm * th * 4                                           # f32 matmul1 / GELU interm.
    est += tm * th * w_bytes                                     # cast copy of h for matmul2
    est += tm * D * 4                                            # f32 matmul2 result
    if with_acc:
        est += tm * D * 4                                        # accumulator scratch
    return est


def feedforward(x, w1, b1, w2, b2, *, block_m=None, block_h=None):
    """x: (B, S, D); w1: (D, H); b1: (H,); w2: (H, D); b2: (D,)."""
    B, S, D = x.shape
    H = w1.shape[1]
    M = B * S

    x_bytes = jnp.dtype(x.dtype).itemsize
    w_bytes = jnp.dtype(w1.dtype).itemsize
    pack = 16 if x.dtype == jnp.bfloat16 else 8                  # sublane packing

    vmem_budget = int(_vmem_capacity_bytes() * 0.85)             # per-chip scoped limit

    def _align_m(tm):
        tm = min(tm, _round_up(M, pack))
        if tm >= 256:
            return (tm // 256) * 256                             # 2x256^2 MXU friendly
        return max(pack, (tm // pack) * pack)

    # --- regime selection -----------------------------------------------------
    h_full = _round_up(H, 128)
    # Residency decision assumes the default 2-deep weight pipeline (the safe
    # fallback); if pl.Buffered(1) is honored the real footprint is half this.
    resident_w_bytes = 2 * (D * h_full + h_full * D + h_full + D) * w_bytes
    want_resident = block_h is None or block_h >= H
    resident = want_resident and resident_w_bytes <= vmem_budget // 2

    if resident:
        hp = h_full
        tm = _align_m(block_m if block_m is not None else 512)
        while (tm > pack and
               _vmem_estimate(tm, hp, D, x_bytes, w_bytes,
                              weight_bufs=2, with_acc=False) * 1.15 > vmem_budget):
            tm = _align_m(max(pack, tm // 2))
        h_pad = hp
        m_pad = _round_up(M, tm)
        grid = (m_pad // tm,)
    else:
        # Streaming: per grid step intensity ~ 2*tm/w_bytes flop per HBM byte.
        tm_default = 1024 if vmem_budget >= (90 << 20) else 768  # v5e/v6e vs v7x
        tm = _align_m(block_m if block_m is not None else tm_default)
        th = block_h if block_h is not None else 2048
        th = _round_up(min(th, H), 256)                          # 256-aligned for MXU
        while _vmem_estimate(tm, th, D, x_bytes, w_bytes,
                             weight_bufs=2, with_acc=True) * 1.15 > vmem_budget:
            if th > 256:
                th = _round_up(max(256, th // 2), 256)
            elif tm > 256:
                tm = _align_m(max(256, tm // 2))
            else:
                break
        h_pad = _round_up(H, th)
        m_pad = _round_up(M, tm)
        grid = (m_pad // tm, h_pad // th)

    # --- pad operands (zero padding is exact: padded M rows are sliced off,
    #     padded H columns contribute gelu(0 + 0) @ 0 = 0). ---------------------
    xf = x.reshape(M, D)
    if m_pad != M:
        xf = jnp.pad(xf, ((0, m_pad - M), (0, 0)))
    w1p, b1p, w2p = w1, b1, w2
    if h_pad != H:
        w1p = jnp.pad(w1, ((0, 0), (0, h_pad - H)))
        b1p = jnp.pad(b1, ((0, h_pad - H),))
        w2p = jnp.pad(w2, ((0, h_pad - H), (0, 0)))
    b1_2d = b1p.reshape(1, h_pad)
    b2_2d = b2.reshape(1, D)

    m_tiles = m_pad // tm
    weight_elems = w1p.size + w2p.size + b1_2d.size + b2_2d.size
    weight_reads = 1 if resident else m_tiles                    # re-fetched per M tile
    cost = pl.CostEstimate(
        flops=int(4 * M * D * H),
        transcendentals=int(M * H),
        bytes_accessed=int(2 * m_pad * D * x_bytes + weight_reads * weight_elems * w_bytes),
    )

    if resident:
        def _call(weight_mode):
            wkw = {} if weight_mode is None else {"pipeline_mode": weight_mode}
            grid_spec = pltpu.PrefetchScalarGridSpec(
                num_scalar_prefetch=0,
                grid=grid,
                in_specs=[
                    pl.BlockSpec((tm, D), lambda i: (i, 0)),        # x tile (streamed)
                    pl.BlockSpec((D, hp), lambda i: (0, 0), **wkw),  # w1 (resident)
                    pl.BlockSpec((1, hp), lambda i: (0, 0), **wkw),  # b1
                    pl.BlockSpec((hp, D), lambda i: (0, 0), **wkw),  # w2 (resident)
                    pl.BlockSpec((1, D), lambda i: (0, 0), **wkw),   # b2
                ],
                out_specs=pl.BlockSpec((tm, D), lambda i: (i, 0)),
            )
            return pl.pallas_call(
                ffn_resident_kernel,
                out_shape=jax.ShapeDtypeStruct((m_pad, D), x.dtype),
                grid_spec=grid_spec,
                compiler_params=pltpu.CompilerParams(
                    dimension_semantics=("parallel",),
                    vmem_limit_bytes=vmem_budget),
                cost_estimate=cost,
            )(xf, w1p, b1_2d, w2p, b2_2d)

        out = None
        if hasattr(pl, "Buffered"):
            try:
                # Grid-invariant weights: single buffer halves their VMEM footprint.
                out = _call(pl.Buffered(1))
            except Exception:
                out = None
        if out is None:
            out = _call(None)                                    # default 2-deep pipeline
    else:
        out = pl.pallas_call(
            ffn_streaming_kernel,
            out_shape=jax.ShapeDtypeStruct((m_pad, D), x.dtype),
            grid_spec=pltpu.PrefetchScalarGridSpec(
                num_scalar_prefetch=0,
                grid=grid,
                in_specs=[
                    pl.BlockSpec((tm, D), lambda i, k: (i, 0)),   # x tile
                    pl.BlockSpec((D, th), lambda i, k: (0, k)),   # w1 k-tile (streamed)
                    pl.BlockSpec((1, th), lambda i, k: (0, k)),   # b1 k-tile
                    pl.BlockSpec((th, D), lambda i, k: (k, 0)),   # w2 k-tile (streamed)
                    pl.BlockSpec((1, D), lambda i, k: (0, 0)),    # b2
                ],
                out_specs=pl.BlockSpec((tm, D), lambda i, k: (i, 0)),
                scratch_shapes=[pltpu.VMEM((tm, D), jnp.float32)],
            ),
            compiler_params=pltpu.CompilerParams(
                dimension_semantics=("parallel", "arbitrary"),
                vmem_limit_bytes=vmem_budget),
            cost_estimate=cost,
        )(xf, w1p, b1_2d, w2p, b2_2d)

    return out[:M].reshape(B, S, D)


def init_params(key, dim, mult=4, dtype=jnp.float32):
    """Deterministic synthetic init matching nn.Linear shapes (pre-transposed)."""
    hidden = dim * mult
    k1, k2, k3, k4 = jax.random.split(key, 4)
    w1 = jax.random.uniform(k1, (dim, hidden), dtype, -1.0, 1.0) / jnp.sqrt(dim).astype(dtype)
    b1 = jax.random.uniform(k2, (hidden,), dtype, -1.0, 1.0) / jnp.sqrt(dim).astype(dtype)
    w2 = jax.random.uniform(k3, (hidden, dim), dtype, -1.0, 1.0) / jnp.sqrt(hidden).astype(dtype)
    b2 = jax.random.uniform(k4, (dim,), dtype, -1.0, 1.0) / jnp.sqrt(hidden).astype(dtype)
    return w1, b1, w2, b2


if __name__ == "__main__":
    # Lane-aligned small demo: dim and dim*mult are multiples of 128 so every
    # vreg lane / MXU column is used and output stores are unmasked.
    B, S, dim, mult = 2, 64, 128, 4          # M = 128, H = 512

    key = jax.random.PRNGKey(0)
    kx, kp = jax.random.split(key)
    x = jax.random.normal(kx, (B, S, dim), jnp.float32)
    w1, b1, w2, b2 = init_params(kp, dim, mult, jnp.float32)

    # Pure-JAX f32 reference.
    h_ref = x.reshape(-1, dim) @ w1 + b1
    h_ref = 0.5 * h_ref * (1.0 + jax.lax.erf(h_ref / jnp.sqrt(2.0)))
    ref = (h_ref @ w2 + b2).reshape(B, S, dim)

    # 1) Default path: weight-resident, fused, no-scratch kernel.
    out = jax.block_until_ready(feedforward(x, w1, b1, w2, b2))
    assert out.shape == (B, S, dim)
    assert jnp.allclose(out, ref, atol=1e-3, rtol=1e-3), "resident path mismatch"

    # 2) Forced weight-streaming path (exercises the H-reduction accumulator).
    out_s = jax.block_until_ready(feedforward(x, w1, b1, w2, b2, block_m=64, block_h=256))
    assert jnp.allclose(out_s, ref, atol=1e-3, rtol=1e-3), "streaming path mismatch"

    # 3) bf16 fast path (bf16 MXU operands, f32 accumulation) — loose check.
    xb = x.astype(jnp.bfloat16)
    w1b, b1b, w2b, b2b = (a.astype(jnp.bfloat16) for a in (w1, b1, w2, b2))
    out_bf16 = jax.block_until_ready(feedforward(xb, w1b, b1b, w2b, b2b))
    err = float(jnp.max(jnp.abs(out_bf16.astype(jnp.float32) - ref)))
    assert err < 0.1, f"bf16 path too far from reference (max abs err {err})"

    print("KERNEL_OK")
</pallas_src>

<mosaic_0001>
module attributes {stable_mosaic.version = 11 : i64} {
  func.func @ffn_resident_kernel(%arg0: i32, %arg1: memref<128x128xf32, #tpu.memory_space<vmem>>, %arg2: memref<128x512xf32, #tpu.memory_space<vmem>>, %arg3: memref<1x512xf32, #tpu.memory_space<vmem>>, %arg4: memref<512x128xf32, #tpu.memory_space<vmem>>, %arg5: memref<1x128xf32, #tpu.memory_space<vmem>>, %arg6: memref<128x128xf32, #tpu.memory_space<vmem>>) attributes {dimension_semantics = [#tpu.dimension_semantics<parallel>], iteration_bounds = array<i64: 1>, scalar_prefetch = 0 : i64, scratch_operands = 0 : i64, tpu.core_type = #tpu.core_type<tc>, window_params = [{transform_indices = @transform_0, window_bounds = array<i64: 128, 128>}, {pipeline_mode = #tpu.pipeline_mode<synchronous>, transform_indices = @transform_1, window_bounds = array<i64: 128, 512>}, {pipeline_mode = #tpu.pipeline_mode<synchronous>, transform_indices = @transform_2, window_bounds = array<i64: 1, 512>}, {pipeline_mode = #tpu.pipeline_mode<synchronous>, transform_indices = @transform_3, window_bounds = array<i64: 512, 128>}, {pipeline_mode = #tpu.pipeline_mode<synchronous>, transform_indices = @transform_4, window_bounds = array<i64: 1, 128>}, {transform_indices = @transform_5, window_bounds = array<i64: 128, 128>}]} {
    %c0 = arith.constant 0 : index
    %c0_0 = arith.constant 0 : index
    %0 = vector.load %arg1[%c0, %c0_0] : memref<128x128xf32, #tpu.memory_space<vmem>>, vector<128x128xf32>
    %c0_1 = arith.constant 0 : index
    %c0_2 = arith.constant 0 : index
    %1 = vector.load %arg2[%c0_1, %c0_2] : memref<128x512xf32, #tpu.memory_space<vmem>>, vector<128x512xf32>
    %cst = arith.constant dense<0.000000e+00> : vector<128x512xf32>
    %2 = tpu.matmul %0, %1, %cst {dimension_numbers = #tpu.dot_dimension_numbers<[1], [0], [0], [1], [0, 0, 1, 1], [], []>} : vector<128x128xf32>, vector<128x512xf32>, vector<128x512xf32> -> vector<128x512xf32>
    %c0_3 = arith.constant 0 : index
    %c0_4 = arith.constant 0 : index
    %3 = vector.load %arg3[%c0_3, %c0_4] : memref<1x512xf32, #tpu.memory_space<vmem>>, vector<1x512xf32>
    %4 = vector.broadcast %3 : vector<1x512xf32> to vector<128x512xf32>
    %5 = arith.addf %2, %4 : vector<128x512xf32>
    %cst_5 = arith.constant 5.000000e-01 : f32
    %6 = vector.broadcast %cst_5 : f32 to vector<128x512xf32>
    %7 = arith.mulf %6, %5 : vector<128x512xf32>
    %cst_6 = arith.constant 0.707106769 : f32
    %8 = vector.broadcast %cst_6 : f32 to vector<128x512xf32>
    %9 = arith.mulf %5, %8 : vector<128x512xf32>
    %10 = math.erf %9 : vector<128x512xf32>
    %cst_7 = arith.constant 1.000000e+00 : f32
    %11 = vector.broadcast %cst_7 : f32 to vector<128x512xf32>
    %12 = arith.addf %11, %10 : vector<128x512xf32>
    %13 = arith.mulf %7, %12 : vector<128x512xf32>
    %c0_8 = arith.constant 0 : index
    %c0_9 = arith.constant 0 : index
    %14 = vector.load %arg4[%c0_8, %c0_9] : memref<512x128xf32, #tpu.memory_space<vmem>>, vector<512x128xf32>
    %cst_10 = arith.constant dense<0.000000e+00> : vector<128x128xf32>
    %15 = tpu.matmul %13, %14, %cst_10 {dimension_numbers = #tpu.dot_dimension_numbers<[1], [0], [0], [1], [0, 0, 1, 1], [], []>} : vector<128x512xf32>, vector<512x128xf32>, vector<128x128xf32> -> vector<128x128xf32>
    %c0_11 = arith.constant 0 : index
    %c0_12 = arith.constant 0 : index
    %16 = vector.load %arg5[%c0_11, %c0_12] : memref<1x128xf32, #tpu.memory_space<vmem>>, vector<1x128xf32>
    %17 = vector.broadcast %16 : vector<1x128xf32> to vector<128x128xf32>
    %18 = arith.addf %15, %17 : vector<128x128xf32>
    %c0_13 = arith.constant 0 : index
    %c0_14 = arith.constant 0 : index
    %19 = vector.load %arg6[%c0_13, %c0_14] : memref<128x128xf32, #tpu.memory_space<vmem>>, vector<128x128xf32>
    tpu.vector_store %arg6[%c0_13, %c0_14], %18 {strides = array<i32>} : memref<128x128xf32, #tpu.memory_space<vmem>>, vector<128x128xf32>,
    return
  }
  func.func @transform_0(%arg0: i32) -> (i32, i32) {
    %c0_i32 = arith.constant 0 : i32
    %c0_i32_0 = arith.constant 0 : i32
    return %arg0, %c0_i32 : i32, i32
  }
  func.func @transform_1(%arg0: i32) -> (i32, i32) {
    %c0_i32 = arith.constant 0 : i32
    %c0_i32_0 = arith.constant 0 : i32
    %c0_i32_1 = arith.constant 0 : i32
    return %c0_i32, %c0_i32_0 : i32, i32
  }
  func.func @transform_2(%arg0: i32) -> (i32, i32) {
    %c0_i32 = arith.constant 0 : i32
    %c0_i32_0 = arith.constant 0 : i32
    %c0_i32_1 = arith.constant 0 : i32
    return %c0_i32, %c0_i32_0 : i32, i32
  }
  func.func @transform_3(%arg0: i32) -> (i32, i32) {
    %c0_i32 = arith.constant 0 : i32
    %c0_i32_0 = arith.constant 0 : i32
    %c0_i32_1 = arith.constant 0 : i32
    return %c0_i32, %c0_i32_0 : i32, i32
  }
  func.func @transform_4(%arg0: i32) -> (i32, i32) {
    %c0_i32 = arith.constant 0 : i32
    %c0_i32_0 = arith.constant 0 : i32
    %c0_i32_1 = arith.constant 0 : i32
    return %c0_i32, %c0_i32_0 : i32, i32
  }
  func.func @transform_5(%arg0: i32) -> (i32, i32) {
    %c0_i32 = arith.constant 0 : i32
    %c0_i32_0 = arith.constant 0 : i32
    return %arg0, %c0_i32 : i32, i32
  }
}

module attributes {stable_mosaic.version = 11 : i64} {
  func.func @ffn_resident_kernel(%arg0: i32, %arg1: memref<128x128xf32, #tpu.memory_space<vmem>>, %arg2: memref<128x512xf32, #tpu.memory_space<vmem>>, %arg3: memref<1x512xf32, #tpu.memory_space<vmem>>, %arg4: memref<512x128xf32, #tpu.memory_space<vmem>>, %arg5: memref<1x128xf32, #tpu.memory_space<vmem>>, %arg6: memref<128x128xf32, #tpu.memory_space<vmem>>) attributes {dimension_semantics = [#tpu.dimension_semantics<parallel>], iteration_bounds = array<i64: 1>, scalar_prefetch = 0 : i64, scratch_operands = 0 : i64, tpu.core_type = #tpu.core_type<tc>, window_params = [{transform_indices = @transform_0, window_bounds = array<i64: 128, 128>}, {pipeline_mode = #tpu.pipeline_mode<synchronous>, transform_indices = @transform_1, window_bounds = array<i64: 128, 512>}, {pipeline_mode = #tpu.pipeline_mode<synchronous>, transform_indices = @transform_2, window_bounds = array<i64: 1, 512>}, {pipeline_mode = #tpu.pipeline_mode<synchronous>, transform_indices = @transform_3, window_bounds = array<i64: 512, 128>}, {pipeline_mode = #tpu.pipeline_mode<synchronous>, transform_indices = @transform_4, window_bounds = array<i64: 1, 128>}, {transform_indices = @transform_5, window_bounds = array<i64: 128, 128>}]} {
    %c0 = arith.constant 0 : index
    %c0_0 = arith.constant 0 : index
    %0 = vector.load %arg1[%c0, %c0_0] : memref<128x128xf32, #tpu.memory_space<vmem>>, vector<128x128xf32>
    %c0_1 = arith.constant 0 : index
    %c0_2 = arith.constant 0 : index
    %1 = vector.load %arg2[%c0_1, %c0_2] : memref<128x512xf32, #tpu.memory_space<vmem>>, vector<128x512xf32>
    %cst = arith.constant dense<0.000000e+00> : vector<128x512xf32>
    %2 = tpu.matmul %0, %1, %cst {dimension_numbers = #tpu.dot_dimension_numbers<[1], [0], [0], [1], [0, 0, 1, 1], [], []>} : vector<128x128xf32>, vector<128x512xf32>, vector<128x512xf32> -> vector<128x512xf32>
    %c0_3 = arith.constant 0 : index
    %c0_4 = arith.constant 0 : index
    %3 = vector.load %arg3[%c0_3, %c0_4] : memref<1x512xf32, #tpu.memory_space<vmem>>, vector<1x512xf32>
    %4 = vector.broadcast %3 : vector<1x512xf32> to vector<128x512xf32>
    %5 = arith.addf %2, %4 : vector<128x512xf32>
    %cst_5 = arith.constant 5.000000e-01 : f32
    %6 = vector.broadcast %cst_5 : f32 to vector<128x512xf32>
    %7 = arith.mulf %6, %5 : vector<128x512xf32>
    %cst_6 = arith.constant 0.707106769 : f32
    %8 = vector.broadcast %cst_6 : f32 to vector<128x512xf32>
    %9 = arith.mulf %5, %8 : vector<128x512xf32>
    %10 = math.erf %9 : vector<128x512xf32>
    %cst_7 = arith.constant 1.000000e+00 : f32
    %11 = vector.broadcast %cst_7 : f32 to vector<128x512xf32>
    %12 = arith.addf %11, %10 : vector<128x512xf32>
    %13 = arith.mulf %7, %12 : vector<128x512xf32>
    %c0_8 = arith.constant 0 : index
    %c0_9 = arith.constant 0 : index
    %14 = vector.load %arg4[%c0_8, %c0_9] : memref<512x128xf32, #tpu.memory_space<vmem>>, vector<512x128xf32>
    %cst_10 = arith.constant dense<0.000000e+00> : vector<128x128xf32>
    %15 = tpu.matmul %13, %14, %cst_10 {dimension_numbers = #tpu.dot_dimension_numbers<[1], [0], [0], [1], [0, 0, 1, 1], [], []>} : vector<128x512xf32>, vector<512x128xf32>, vector<128x128xf32> -> vector<128x128xf32>
    %c0_11 = arith.constant 0 : index
    %c0_12 = arith.constant 0 : index
    %16 = vector.load %arg5[%c0_11, %c0_12] : memref<1x128xf32, #tpu.memory_space<vmem>>, vector<1x128xf32>
    %17 = vector.broadcast %16 : vector<1x128xf32> to vector<128x128xf32>
    %18 = arith.addf %15, %17 : vector<128x128xf32>
    %c0_13 = arith.constant 0 : index
    %c0_14 = arith.constant 0 : index
    %19 = vector.load %arg6[%c0_13, %c0_14] : memref<128x128xf32, #tpu.memory_space<vmem>>, vector<128x128xf32>
    tpu.vector_store %arg6[%c0_13, %c0_14], %18 {strides = array<i32>} : memref<128x128xf32, #tpu.memory_space<vmem>>, vector<128x128xf32>,
    return
  }
  func.func @transform_0(%arg0: i32) -> (i32, i32) {
    %c0_i32 = arith.constant 0 : i32
    %c0_i32_0 = arith.constant 0 : i32
    return %arg0, %c0_i32 : i32, i32
  }
  func.func @transform_1(%arg0: i32) -> (i32, i32) {
    %c0_i32 = arith.constant 0 : i32
    %c0_i32_0 = arith.constant 0 : i32
    %c0_i32_1 = arith.constant 0 : i32
    return %c0_i32, %c0_i32_0 : i32, i32
  }
  func.func @transform_2(%arg0: i32) -> (i32, i32) {
    %c0_i32 = arith.constant 0 : i32
    %c0_i32_0 = arith.constant 0 : i32
    %c0_i32_1 = arith.constant 0 : i32
    return %c0_i32, %c0_i32_0 : i32, i32
  }
  func.func @transform_3(%arg0: i32) -> (i32, i32) {
    %c0_i32 = arith.constant 0 : i32
    %c0_i32_0 = arith.constant 0 : i32
    %c0_i32_1 = arith.constant 0 : i32
    return %c0_i32, %c0_i32_0 : i32, i32
  }
  func.func @transform_4(%arg0: i32) -> (i32, i32) {
    %c0_i32 = arith.constant 0 : i32
    %c0_i32_0 = arith.constant 0 : i32
    %c0_i32_1 = arith.constant 0 : i32
    return %c0_i32, %c0_i32_0 : i32, i32
  }
  func.func @transform_5(%arg0: i32) -> (i32, i32) {
    %c0_i32 = arith.constant 0 : i32
    %c0_i32_0 = arith.constant 0 : i32
    return %arg0, %c0_i32 : i32, i32
  }
}

</mosaic_0001>

<llo_original>
// kernel: tpu_custom_call.1
$region0: #{tpu_custom_call.1}
  #allocation0 [shape = 'u32[]', space=smem, size = 0x4, offset = 0x4, fixed_abs, tag = 'smem constant byte address 0x4 - core index']
  #allocation1 [shape = 'u32[144,128]{1,0:T(1,128)}', space=vmem, size = 0x12000, scoped, tag = 'internal scratch']
  %s0 = inlined_call_operand.hbm [shape: f32[128,128], index: 0, kind: input, shape index: {}]
  %s1 = inlined_call_operand.hbm [shape: f32[128,512], index: 1, kind: input, shape index: {}]
  %s2 = inlined_call_operand.vmem [shape: f32[1,512], index: 2, kind: input, shape index: {}]
  %s3 = inlined_call_operand.hbm [shape: f32[512,128], index: 3, kind: input, shape index: {}]
  %s4 = inlined_call_operand.vmem [shape: f32[1,128], index: 4, kind: input, shape index: {}]
  %s5 = inlined_call_operand.hbm [shape: f32[128,128], index: 5, kind: output, shape index: {}]
  %s6 = sld [smem:[#allocation0]]
  $region42: #{tpu_custom_call.1} parent=0
    _
  %s8 = ssub.s32 1, %s6
  %s9 = scalar_select 0, %s8, %s6
  $region1: #{tpu_custom_call.1} parent=0
    #allocation2 [shape = 'u8[65536]{0}', space=vmem, size = 0x10000, scoped, tag = 'input window, operand 0, single buffered']
    #allocation3 [shape = 's32[1]{0}', space=sflag, size = 0x4, scoped, tag = 'scoped memory for tpu_custom_call.1']
    #allocation4 [shape = 's32[1]{0}', space=sflag, size = 0x4, scoped, tag = 'scoped memory for tpu_custom_call.1']
    #allocation5 [shape = 'u8[262144]{0}', space=vmem, size = 0x40000, scoped, tag = 'input window, operand 1, single buffered']
    #allocation6 [shape = 's32[1]{0}', space=sflag, size = 0x4, scoped, tag = 'scoped memory for tpu_custom_call.1']
    #allocation7 [shape = 'u8[262144]{0}', space=vmem, size = 0x40000, scoped, tag = 'input window, operand 3, single buffered']
    #allocation8 [shape = 'u8[65536]{0}', space=vmem, size = 0x10000, scoped, tag = 'output window, operand 0, single buffered']
    %10 = vsyncpa [#allocation3], 0
    %11 = vsyncpa [#allocation6], 0
    %12 = vsyncpa [#allocation4], 0
    // Predicated region
    $region2: #{tpu_custom_call.1} parent=1 // pred_check
      _
    $region3: #{tpu_custom_call.1} parent=1 // pred_check_branch
      %14 = sbr.rel (0) target = $region5
    $region4: #{tpu_custom_call.1} parent=1 // pred_region
      %s16 = ssub.s32 2048, 2048
      %17 = vsyncadd [#allocation3], %s16
      %s18 = sshll.u32 [#allocation2], 4
      %s19 = int_to_ptr.vmem [resolvable:$true] %s18
      %24 = dma.hbm_to_vmem [thread:$0]  %s0, 2048, %s19, [#allocation3], 128, 128, 8
    $region5: #{tpu_custom_call.1} parent=1 // pred_fallthru
      _
    // Predicated region
    $region6: #{tpu_custom_call.1} parent=1 // pred_check
      _
    $region7: #{tpu_custom_call.1} parent=1 // pred_check_branch
      %26 = sbr.rel (0) target = $region9
    $region8: #{tpu_custom_call.1} parent=1 // pred_region
      %s28 = ssub.s32 8192, 8192
      %29 = vsyncadd [#allocation6], %s28
      %s30 = sshll.u32 [#allocation5], 4
      %s31 = int_to_ptr.vmem [resolvable:$true] %s30
      %36 = dma.hbm_to_vmem [thread:$0]  %s1, 8192, %s31, [#allocation6], 512, 512, 32
    $region9: #{tpu_custom_call.1} parent=1 // pred_fallthru
      _
    // Predicated region
    $region10: #{tpu_custom_call.1} parent=1 // pred_check
      _
    $region11: #{tpu_custom_call.1} parent=1 // pred_check_branch
      %38 = sbr.rel (0) target = $region13
    $region12: #{tpu_custom_call.1} parent=1 // pred_region
      _
    $region13: #{tpu_custom_call.1} parent=1 // pred_fallthru
      _
    // Predicated region
    $region14: #{tpu_custom_call.1} parent=1 // pred_check
      _
    $region15: #{tpu_custom_call.1} parent=1 // pred_check_branch
      %40 = sbr.rel (0) target = $region17
    $region16: #{tpu_custom_call.1} parent=1 // pred_region
      %s42 = ssub.s32 8192, 8192
      %43 = vsyncadd [#allocation6], %s42
      %s44 = sshll.u32 [#allocation7], 4
      %s45 = int_to_ptr.vmem [resolvable:$true] %s44
      %50 = dma.hbm_to_vmem [thread:$0]  %s3, 8192, %s45, [#allocation6], 128, 128, 8
    $region17: #{tpu_custom_call.1} parent=1 // pred_fallthru
      _
    // Predicated region
    $region18: #{tpu_custom_call.1} parent=1 // pred_check
      _
    $region19: #{tpu_custom_call.1} parent=1 // pred_check_branch
      %52 = sbr.rel (0) target = $region21
    $region20: #{tpu_custom_call.1} parent=1 // pred_region
      _
    $region21: #{tpu_custom_call.1} parent=1 // pred_fallthru
      _
    // Predicated region
    $region22: #{tpu_custom_call.1} parent=1 // pred_check
      _
    $region23: #{tpu_custom_call.1} parent=1 // pred_check_branch
      %54 = sbr.rel (0) target = $region25
    $region24: #{tpu_custom_call.1} parent=1 // pred_region
      %55 = dma.done [#allocation3], 2048
    $region25: #{tpu_custom_call.1} parent=1 // pred_fallthru
      _
    // Predicated region
    $region26: #{tpu_custom_call.1} parent=1 // pred_check
      _
    $region27: #{tpu_custom_call.1} parent=1 // pred_check_branch
      %57 = sbr.rel (0) target = $region29
    $region28: #{tpu_custom_call.1} parent=1 // pred_region
      %58 = dma.done [#allocation6], 8192
    $region29: #{tpu_custom_call.1} parent=1 // pred_fallthru
      _
    // Predicated region
    $region30: #{tpu_custom_call.1} parent=1 // pred_check
      _
    $region31: #{tpu_custom_call.1} parent=1 // pred_check_branch
      %60 = sbr.rel (0) target = $region33
    $region32: #{tpu_custom_call.1} parent=1 // pred_region
      %61 = dma.done [#allocation6], 8192
    $region33: #{tpu_custom_call.1} parent=1 // pred_fallthru
      _
    %v62 = vld [vmem:[#allocation2] sm:$0xff]
    %v63 = vld [vmem:[#allocation2 + $0x8] sm:$0xff]
    %v64 = vld [vmem:[#allocation2 + $0x10] sm:$0xff]
    %v65 = vld [vmem:[#allocation2 + $0x18] sm:$0xff]
    %v66 = vld [vmem:[#allocation2 + $0x20] sm:$0xff]
    %v67 = vld [vmem:[#allocation2 + $0x28] sm:$0xff]
    %v68 = vld [vmem:[#allocation2 + $0x30] sm:$0xff]
    %v69 = vld [vmem:[#allocation2 + $0x38] sm:$0xff]
    %v70 = vld [vmem:[#allocation2 + $0x40] sm:$0xff]
    %v71 = vld [vmem:[#allocation2 + $0x48] sm:$0xff]
    %v72 = vld [vmem:[#allocation2 + $0x50] sm:$0xff]
    %v73 = vld [vmem:[#allocation2 + $0x58] sm:$0xff]
    %v74 = vld [vmem:[#allocation2 + $0x60] sm:$0xff]
    %v75 = vld [vmem:[#allocation2 + $0x68] sm:$0xff]
    %v76 = vld [vmem:[#allocation2 + $0x70] sm:$0xff]
    %v77 = vld [vmem:[#allocation2 + $0x78] sm:$0xff]
    %v78 = vld [vmem:[#allocation5] sm:$0xff]
    %v79 = vld [vmem:[#allocation5 + $0x8] sm:$0xff]
    %v80 = vld [vmem:[#allocation5 + $0x10] sm:$0xff]
    %v81 = vld [vmem:[#allocation5 + $0x18] sm:$0xff]
    %v82 = vld [vmem:[#allocation5 + $0x20] sm:$0xff]
    %v83 = vld [vmem:[#allocation5 + $0x28] sm:$0xff]
    %v84 = vld [vmem:[#allocation5 + $0x30] sm:$0xff]
    %v85 = vld [vmem:[#allocation5 + $0x38] sm:$0xff]
    %v86 = vld [vmem:[#allocation5 + $0x40] sm:$0xff]
    %v87 = vld [vmem:[#allocation5 + $0x48] sm:$0xff]
    %v88 = vld [vmem:[#allocation5 + $0x50] sm:$0xff]
    %v89 = vld [vmem:[#allocation5 + $0x58] sm:$0xff]
    %v90 = vld [vmem:[#allocation5 + $0x60] sm:$0xff]
    %v91 = vld [vmem:[#allocation5 + $0x68] sm:$0xff]
    %v92 = vld [vmem:[#allocation5 + $0x70] sm:$0xff]
    %v93 = vld [vmem:[#allocation5 + $0x78] sm:$0xff]
    %v94 = vld [vmem:[#allocation5 + $0x80] sm:$0xff]
    %v95 = vld [vmem:[#allocation5 + $0x88] sm:$0xff]
    %v96 = vld [vmem:[#allocation5 + $0x90] sm:$0xff]
    %v97 = vld [vmem:[#allocation5 + $0x98] sm:$0xff]
    %v98 = vld [vmem:[#allocation5 + $0xa0] sm:$0xff]
    %v99 = vld [vmem:[#allocation5 + $0xa8] sm:$0xff]
    %v100 = vld [vmem:[#allocation5 + $0xb0] sm:$0xff]
    %v101 = vld [vmem:[#allocation5 + $0xb8] sm:$0xff]
    %v102 = vld [vmem:[#allocation5 + $0xc0] sm:$0xff]
    %v103 = vld [vmem:[#allocation5 + $0xc8] sm:$0xff]
    %v104 = vld [vmem:[#allocation5 + $0xd0] sm:$0xff]
    %v105 = vld [vmem:[#allocation5 + $0xd8] sm:$0xff]
    %v106 = vld [vmem:[#allocation5 + $0xe0] sm:$0xff]
    %v107 = vld [vmem:[#allocation5 + $0xe8] sm:$0xff]
    %v108 = vld [vmem:[#allocation5 + $0xf0] sm:$0xff]
    %v109 = vld [vmem:[#allocation5 + $0xf8] sm:$0xff]
    %v110 = vld [vmem:[#allocation5 + $0x100] sm:$0xff]
    %v111 = vld [vmem:[#allocation5 + $0x108] sm:$0xff]
    %v112 = vld [vmem:[#allocation5 + $0x110] sm:$0xff]
    %v113 = vld [vmem:[#allocation5 + $0x118] sm:$0xff]
    %v114 = vld [vmem:[#allocation5 + $0x120] sm:$0xff]
    %v115 = vld [vmem:[#allocation5 + $0x128] sm:$0xff]
    %v116 = vld [vmem:[#allocation5 + $0x130] sm:$0xff]
    %v117 = vld [vmem:[#allocation5 + $0x138] sm:$0xff]
    %v118 = vld [vmem:[#allocation5 + $0x140] sm:$0xff]
    %v119 = vld [vmem:[#allocation5 + $0x148] sm:$0xff]
    %v120 = vld [vmem:[#allocation5 + $0x150] sm:$0xff]
    %v121 = vld [vmem:[#allocation5 + $0x158] sm:$0xff]
    %v122 = vld [vmem:[#allocation5 + $0x160] sm:$0xff]
    %v123 = vld [vmem:[#allocation5 + $0x168] sm:$0xff]
    %v124 = vld [vmem:[#allocation5 + $0x170] sm:$0xff]
    %v125 = vld [vmem:[#allocation5 + $0x178] sm:$0xff]
    %v126 = vld [vmem:[#allocation5 + $0x180] sm:$0xff]
    %v127 = vld [vmem:[#allocation5 + $0x188] sm:$0xff]
    %v128 = vld [vmem:[#allocation5 + $0x190] sm:$0xff]
    %v129 = vld [vmem:[#allocation5 + $0x198] sm:$0xff]
    %v130 = vld [vmem:[#allocation5 + $0x1a0] sm:$0xff]
    %v131 = vld [vmem:[#allocation5 + $0x1a8] sm:$0xff]
    %v132 = vld [vmem:[#allocation5 + $0x1b0] sm:$0xff]
    %v133 = vld [vmem:[#allocation5 + $0x1b8] sm:$0xff]
    %v134 = vld [vmem:[#allocation5 + $0x1c0] sm:$0xff]
    %v135 = vld [vmem:[#allocation5 + $0x1c8] sm:$0xff]
    %v136 = vld [vmem:[#allocation5 + $0x1d0] sm:$0xff]
    %v137 = vld [vmem:[#allocation5 + $0x1d8] sm:$0xff]
    %v138 = vld [vmem:[#allocation5 + $0x1e0] sm:$0xff]
    %v139 = vld [vmem:[#allocation5 + $0x1e8] sm:$0xff]
    %v140 = vld [vmem:[#allocation5 + $0x1f0] sm:$0xff]
    %v141 = vld [vmem:[#allocation5 + $0x1f8] sm:$0xff]
    %v142 = vld [vmem:[%s2] sm:$0xf]
    %v144 = vlaneseq
    %v145 = vshrl.u32 %v144, 7
    %v146 = vsub.s32 0, %v145
    %v147 = vrot.slane %v142, %v146
    %v148 = vlaneseq
    %v149 = vshrl.u32 %v148, 7
    %v150 = vsub.s32 1, %v149
    %v151 = vrot.slane %v142, %v150
    %v152 = vlaneseq
    %v153 = vshrl.u32 %v152, 7
    %v154 = vsub.s32 2, %v153
    %v155 = vrot.slane %v142, %v154
    %v156 = vlaneseq
    %v157 = vshrl.u32 %v156, 7
    %v158 = vsub.s32 3, %v157
    %v159 = vrot.slane %v142, %v158
    %164 = vmatprep.subr.mxu0 %v79
    %165 = vmatpush1.msra.mxu0 %v78
    %166 = vmatprep.subr.mxu0 %v83
    %167 = vmatpush1.msra.mxu0 %v82
    %168 = vmatprep.subr.mxu0 %v87
    %169 = vmatpush1.msra.mxu0 %v86
    %170 = vmatprep.subr.mxu0 %v91
    %171 = vmatpush1.msra.mxu0 %v90
    %172 = vmatprep.subr.mxu0 %v95
    %173 = vmatpush1.msra.mxu0 %v94
    %174 = vmatprep.subr.mxu0 %v99
    %175 = vmatpush1.msra.mxu0 %v98
    %176 = vmatprep.subr.mxu0 %v103
    %177 = vmatpush1.msra.mxu0 %v102
    %178 = vmatprep.subr.mxu0 %v107
    %179 = vmatpush1.msra.mxu0 %v106
    %180 = vmatprep.subr.mxu0 %v111
    %181 = vmatpush1.msra.mxu0 %v110
    %182 = vmatprep.subr.mxu0 %v115
    %183 = vmatpush1.msra.mxu0 %v114
    %184 = vmatprep.subr.mxu0 %v119
    %185 = vmatpush1.msra.mxu0 %v118
    %186 = vmatprep.subr.mxu0 %v123
    %187 = vmatpush1.msra.mxu0 %v122
    %188 = vmatprep.subr.mxu0 %v127
    %189 = vmatpush1.msra.mxu0 %v126
    %190 = vmatprep.subr.mxu0 %v131
    %191 = vmatpush1.msra.mxu0 %v130
    %192 = vmatprep.subr.mxu0 %v135
    %193 = vmatpush1.msra.mxu0 %v134
    %194 = vmatprep.subr.mxu0 %v139
    %195 = vmatpush1.msra.mxu0 %v138
    %196 = vmatprep.subr.mxu0 0.0
    %197 = vmatpush1.msra.mxu0 0.0
    %198 = vmatprep.subr.mxu0 0.0
    %199 = vmatpush1.msra.mxu0 0.0
    %200 = vmatprep.subr.mxu0 0.0
    %201 = vmatpush1.msra.mxu0 0.0
    %202 = vmatprep.subr.mxu0 0.0
    %203 = vmatpush1.msra.mxu0 0.0
    %204 = vmatprep.subr.mxu0 0.0
    %205 = vmatpush1.msra.mxu0 0.0
    %206 = vmatprep.subr.mxu0 0.0
    %207 = vmatpush1.msra.mxu0 0.0
    %208 = vmatprep.subr.mxu0 0.0
    %209 = vmatpush1.msra.mxu0 0.0
    %210 = vmatprep.subr.mxu0 0.0
    %211 = vmatpush1.msra.mxu0 0.0
    %212 = vmatprep.subr.mxu0 0.0
    %213 = vmatpush1.msra.mxu0 0.0
    %214 = vmatprep.subr.mxu0 0.0
    %215 = vmatpush1.msra.mxu0 0.0
    %216 = vmatprep.subr.mxu0 0.0
    %217 = vmatpush1.msra.mxu0 0.0
    %218 = vmatprep.subr.mxu0 0.0
    %219 = vmatpush1.msra.mxu0 0.0
    %220 = vmatprep.subr.mxu0 0.0
    %221 = vmatpush1.msra.mxu0 0.0
    %222 = vmatprep.subr.mxu0 0.0
    %223 = vmatpush1.msra.mxu0 0.0
    %224 = vmatprep.subr.mxu0 0.0
    %225 = vmatpush1.msra.mxu0 0.0
    %226 = vmatprep.subr.mxu0 0.0
    %227 = vmatpush1.msra.mxu0 0.0
    %228 = vmatprep.mubr.f32.mxu0 0.0
    %229 = vmatmul.mubr.f32.gmra.mrb[0].mxu0 %v62
    %v230 = vpop.f32.mrb[0].mxu0
    %v231 = vadd.f32 %v147, %v230
    %v232 = vpop.f32.mrb[0].mxu0
    %v233 = vadd.f32 %v151, %v232
    %234 = vmatprep.mubr.f32.mxu0 0.0
    %235 = vmatmul.mubr.f32.gmra.mrb[0].mxu0 %v63
    %v236 = vpop.f32.mrb[0].mxu0
    %v237 = vadd.f32 %v147, %v236
    %v238 = vpop.f32.mrb[0].mxu0
    %v239 = vadd.f32 %v151, %v238
    %240 = vmatprep.mubr.f32.mxu0 0.0
    %241 = vmatmul.mubr.f32.gmra.mrb[0].mxu0 %v64
    %v242 = vpop.f32.mrb[0].mxu0
    %v243 = vadd.f32 %v147, %v242
    %v244 = vpop.f32.mrb[0].mxu0
    %v245 = vadd.f32 %v151, %v244
    %246 = vmatprep.mubr.f32.mxu0 0.0
    %247 = vmatmul.mubr.f32.gmra.mrb[0].mxu0 %v65
    %v248 = vpop.f32.mrb[0].mxu0
    %v249 = vadd.f32 %v147, %v248
    %v250 = vpop.f32.mrb[0].mxu0
    %v251 = vadd.f32 %v151, %v250
    %252 = vmatprep.mubr.f32.mxu0 0.0
    %253 = vmatmul.mubr.f32.gmra.mrb[0].mxu0 %v66
    %v254 = vpop.f32.mrb[0].mxu0
    %v255 = vadd.f32 %v147, %v254
    %v256 = vpop.f32.mrb[0].mxu0
    %v257 = vadd.f32 %v151, %v256
    %258 = vmatprep.mubr.f32.mxu0 0.0
    %259 = vmatmul.mubr.f32.gmra.mrb[0].mxu0 %v67
    %v260 = vpop.f32.mrb[0].mxu0
    %v261 = vadd.f32 %v147, %v260
    %v262 = vpop.f32.mrb[0].mxu0
    %v263 = vadd.f32 %v151, %v262
    %264 = vmatprep.mubr.f32.mxu0 0.0
    %265 = vmatmul.mubr.f32.gmra.mrb[0].mxu0 %v68
    %v266 = vpop.f32.mrb[0].mxu0
    %v267 = vadd.f32 %v147, %v266
    %v268 = vpop.f32.mrb[0].mxu0
    %v269 = vadd.f32 %v151, %v268
    %270 = vmatprep.mubr.f32.mxu0 0.0
    %271 = vmatmul.mubr.f32.gmra.mrb[0].mxu0 %v69
    %v272 = vpop.f32.mrb[0].mxu0
    %v273 = vadd.f32 %v147, %v272
    %v274 = vpop.f32.mrb[0].mxu0
    %v275 = vadd.f32 %v151, %v274
    %276 = vmatprep.mubr.f32.mxu0 0.0
    %277 = vmatmul.mubr.f32.gmra.mrb[0].mxu0 %v70
    %v278 = vpop.f32.mrb[0].mxu0
    %v279 = vadd.f32 %v147, %v278
    %v280 = vpop.f32.mrb[0].mxu0
    %v281 = vadd.f32 %v151, %v280
    %282 = vmatprep.mubr.f32.mxu0 0.0
    %283 = vmatmul.mubr.f32.gmra.mrb[0].mxu0 %v71
    %v284 = vpop.f32.mrb[0].mxu0
    %v285 = vadd.f32 %v147, %v284
    %v286 = vpop.f32.mrb[0].mxu0
    %v287 = vadd.f32 %v151, %v286
    %288 = vmatprep.mubr.f32.mxu0 0.0
    %289 = vmatmul.mubr.f32.gmra.mrb[0].mxu0 %v72
    %v290 = vpop.f32.mrb[0].mxu0
    %v291 = vadd.f32 %v147, %v290
    %v292 = vpop.f32.mrb[0].mxu0
    %v293 = vadd.f32 %v151, %v292
    %294 = vmatprep.mubr.f32.mxu0 0.0
    %295 = vmatmul.mubr.f32.gmra.mrb[0].mxu0 %v73
    %v296 = vpop.f32.mrb[0].mxu0
    %v297 = vadd.f32 %v147, %v296
    %v298 = vpop.f32.mrb[0].mxu0
    %v299 = vadd.f32 %v151, %v298
    %300 = vmatprep.mubr.f32.mxu0 0.0
    %301 = vmatmul.mubr.f32.gmra.mrb[0].mxu0 %v74
    %v302 = vpop.f32.mrb[0].mxu0
    %v303 = vadd.f32 %v147, %v302
    %v304 = vpop.f32.mrb[0].mxu0
    %v305 = vadd.f32 %v151, %v304
    %306 = vmatprep.mubr.f32.mxu0 0.0
    %307 = vmatmul.mubr.f32.gmra.mrb[0].mxu0 %v75
    %v308 = vpop.f32.mrb[0].mxu0
    %v309 = vadd.f32 %v147, %v308
    %v310 = vpop.f32.mrb[0].mxu0
    %v311 = vadd.f32 %v151, %v310
    %312 = vmatprep.mubr.f32.mxu0 0.0
    %313 = vmatmul.mubr.f32.gmra.mrb[0].mxu0 %v76
    %v314 = vpop.f32.mrb[0].mxu0
    %v315 = vadd.f32 %v147, %v314
    %v316 = vpop.f32.mrb[0].mxu0
    %v317 = vadd.f32 %v151, %v316
    %318 = vmatprep.mubr.f32.mxu0 0.0
    %319 = vmatmul.mubr.f32.gmra.mrb[0].mxu0 %v77
    %v320 = vpop.f32.mrb[0].mxu0
    %v321 = vadd.f32 %v147, %v320
    %v322 = vpop.f32.mrb[0].mxu0
    %v323 = vadd.f32 %v151, %v322
    %324 = vdwg.mxu0
    %325 = vmatprep.subr.mxu0 %v81
    %326 = vmatpush1.msra.mxu0 %v80
    %327 = vmatprep.subr.mxu0 %v85
    %328 = vmatpush1.msra.mxu0 %v84
    %329 = vmatprep.subr.mxu0 %v89
    %330 = vmatpush1.msra.mxu0 %v88
    %331 = vmatprep.subr.mxu0 %v93
    %332 = vmatpush1.msra.mxu0 %v92
    %333 = vmatprep.subr.mxu0 %v97
    %334 = vmatpush1.msra.mxu0 %v96
    %335 = vmatprep.subr.mxu0 %v101
    %336 = vmatpush1.msra.mxu0 %v100
    %337 = vmatprep.subr.mxu0 %v105
    %338 = vmatpush1.msra.mxu0 %v104
    %339 = vmatprep.subr.mxu0 %v109
    %340 = vmatpush1.msra.mxu0 %v108
    %341 = vmatprep.subr.mxu0 %v113
    %342 = vmatpush1.msra.mxu0 %v112
    %343 = vmatprep.subr.mxu0 %v117
    %344 = vmatpush1.msra.mxu0 %v116
    %345 = vmatprep.subr.mxu0 %v121
    %346 = vmatpush1.msra.mxu0 %v120
    %347 = vmatprep.subr.mxu0 %v125
    %348 = vmatpush1.msra.mxu0 %v124
    %349 = vmatprep.subr.mxu0 %v129
    %350 = vmatpush1.msra.mxu0 %v128
    %351 = vmatprep.subr.mxu0 %v133
    %352 = vmatpush1.msra.mxu0 %v132
    %353 = vmatprep.subr.mxu0 %v137
    %354 = vmatpush1.msra.mxu0 %v136
    %355 = vmatprep.subr.mxu0 %v141
    %356 = vmatpush1.msra.mxu0 %v140
    %357 = vmatprep.subr.mxu0 0.0
    %358 = vmatpush1.msra.mxu0 0.0
    %359 = vmatprep.subr.mxu0 0.0
    %360 = vmatpush1.msra.mxu0 0.0
    %361 = vmatprep.subr.mxu0 0.0
    %362 = vmatpush1.msra.mxu0 0.0
    %363 = vmatprep.subr.mxu0 0.0
    %364 = vmatpush1.msra.mxu0 0.0
    %365 = vmatprep.subr.mxu0 0.0
    %366 = vmatpush1.msra.mxu0 0.0
    %367 = vmatprep.subr.mxu0 0.0
    %368 = vmatpush1.msra.mxu0 0.0
    %369 = vmatprep.subr.mxu0 0.0
    %370 = vmatpush1.msra.mxu0 0.0
    %371 = vmatprep.subr.mxu0 0.0
    %372 = vmatpush1.msra.mxu0 0.0
    %373 = vmatprep.subr.mxu0 0.0
    %374 = vmatpush1.msra.mxu0 0.0
    %375 = vmatprep.subr.mxu0 0.0
    %376 = vmatpush1.msra.mxu0 0.0
    %377 = vmatprep.subr.mxu0 0.0
    %378 = vmatpush1.msra.mxu0 0.0
    %379 = vmatprep.subr.mxu0 0.0
    %380 = vmatpush1.msra.mxu0 0.0
    %381 = vmatprep.subr.mxu0 0.0
    %382 = vmatpush1.msra.mxu0 0.0
    %383 = vmatprep.subr.mxu0 0.0
    %384 = vmatpush1.msra.mxu0 0.0
    %385 = vmatprep.subr.mxu0 0.0
    %386 = vmatpush1.msra.mxu0 0.0
    %387 = vmatprep.subr.mxu0 0.0
    %388 = vmatpush1.msra.mxu0 0.0
    %389 = vmatprep.mubr.f32.mxu0 0.0
    %390 = vmatmul.mubr.f32.gmra.mrb[0].mxu0 %v62
    %v391 = vpop.f32.mrb[0].mxu0
    %v392 = vadd.f32 %v155, %v391
    %v393 = vpop.f32.mrb[0].mxu0
    %v394 = vadd.f32 %v159, %v393
    %395 = vmatprep.mubr.f32.mxu0 0.0
    %396 = vmatmul.mubr.f32.gmra.mrb[0].mxu0 %v63
    %v397 = vpop.f32.mrb[0].mxu0
    %v398 = vadd.f32 %v155, %v397
    %v399 = vpop.f32.mrb[0].mxu0
    %v400 = vadd.f32 %v159, %v399
    %401 = vmatprep.mubr.f32.mxu0 0.0
    %402 = vmatmul.mubr.f32.gmra.mrb[0].mxu0 %v64
    %v403 = vpop.f32.mrb[0].mxu0
    %v404 = vadd.f32 %v155, %v403
    %v405 = vpop.f32.mrb[0].mxu0
    %v406 = vadd.f32 %v159, %v405
    %407 = vmatprep.mubr.f32.mxu0 0.0
    %408 = vmatmul.mubr.f32.gmra.mrb[0].mxu0 %v65
    %v409 = vpop.f32.mrb[0].mxu0
    %v410 = vadd.f32 %v155, %v409
    %v411 = vpop.f32.mrb[0].mxu0
    %v412 = vadd.f32 %v159, %v411
    %413 = vmatprep.mubr.f32.mxu0 0.0
    %414 = vmatmul.mubr.f32.gmra.mrb[0].mxu0 %v66
    %v415 = vpop.f32.mrb[0].mxu0
    %v416 = vadd.f32 %v155, %v415
    %v417 = vpop.f32.mrb[0].mxu0
    %v418 = vadd.f32 %v159, %v417
    %419 = vmatprep.mubr.f32.mxu0 0.0
    %420 = vmatmul.mubr.f32.gmra.mrb[0].mxu0 %v67
    %v421 = vpop.f32.mrb[0].mxu0
    %v422 = vadd.f32 %v155, %v421
    %v423 = vpop.f32.mrb[0].mxu0
    %v424 = vadd.f32 %v159, %v423
    %425 = vmatprep.mubr.f32.mxu0 0.0
    %426 = vmatmul.mubr.f32.gmra.mrb[0].mxu0 %v68
    %v427 = vpop.f32.mrb[0].mxu0
    %v428 = vadd.f32 %v155, %v427
    %v429 = vpop.f32.mrb[0].mxu0
    %v430 = vadd.f32 %v159, %v429
    %431 = vmatprep.mubr.f32.mxu0 0.0
    %432 = vmatmul.mubr.f32.gmra.mrb[0].mxu0 %v69
    %v433 = vpop.f32.mrb[0].mxu0
    %v434 = vadd.f32 %v155, %v433
    %v435 = vpop.f32.mrb[0].mxu0
    %v436 = vadd.f32 %v159, %v435
    %437 = vmatprep.mubr.f32.mxu0 0.0
    %438 = vmatmul.mubr.f32.gmra.mrb[0].mxu0 %v70
    %v439 = vpop.f32.mrb[0].mxu0
    %v440 = vadd.f32 %v155, %v439
    %v441 = vpop.f32.mrb[0].mxu0
    %v442 = vadd.f32 %v159, %v441
    %443 = vmatprep.mubr.f32.mxu0 0.0
    %444 = vmatmul.mubr.f32.gmra.mrb[0].mxu0 %v71
    %v445 = vpop.f32.mrb[0].mxu0
    %v446 = vadd.f32 %v155, %v445
    %v447 = vpop.f32.mrb[0].mxu0
    %v448 = vadd.f32 %v159, %v447
    %449 = vmatprep.mubr.f32.mxu0 0.0
    %450 = vmatmul.mubr.f32.gmra.mrb[0].mxu0 %v72
    %v451 = vpop.f32.mrb[0].mxu0
    %v452 = vadd.f32 %v155, %v451
    %v453 = vpop.f32.mrb[0].mxu0
    %v454 = vadd.f32 %v159, %v453
    %455 = vmatprep.mubr.f32.mxu0 0.0
    %456 = vmatmul.mubr.f32.gmra.mrb[0].mxu0 %v73
    %v457 = vpop.f32.mrb[0].mxu0
    %v458 = vadd.f32 %v155, %v457
    %v459 = vpop.f32.mrb[0].mxu0
    %v460 = vadd.f32 %v159, %v459
    %461 = vmatprep.mubr.f32.mxu0 0.0
    %462 = vmatmul.mubr.f32.gmra.mrb[0].mxu0 %v74
    %v463 = vpop.f32.mrb[0].mxu0
    %v464 = vadd.f32 %v155, %v463
    %v465 = vpop.f32.mrb[0].mxu0
    %v466 = vadd.f32 %v159, %v465
    %467 = vmatprep.mubr.f32.mxu0 0.0
    %468 = vmatmul.mubr.f32.gmra.mrb[0].mxu0 %v75
    %v469 = vpop.f32.mrb[0].mxu0
    %v470 = vadd.f32 %v155, %v469
    %v471 = vpop.f32.mrb[0].mxu0
    %v472 = vadd.f32 %v159, %v471
    %473 = vmatprep.mubr.f32.mxu0 0.0
    %474 = vmatmul.mubr.f32.gmra.mrb[0].mxu0 %v76
    %v475 = vpop.f32.mrb[0].mxu0
    %v476 = vadd.f32 %v155, %v475
    %v477 = vpop.f32.mrb[0].mxu0
    %v478 = vadd.f32 %v159, %v477
    %479 = vmatprep.mubr.f32.mxu0 0.0
    %480 = vmatmul.mubr.f32.gmra.mrb[0].mxu0 %v77
    %v481 = vpop.f32.mrb[0].mxu0
    %v482 = vadd.f32 %v155, %v481
    %v483 = vpop.f32.mrb[0].mxu0
    %v484 = vadd.f32 %v159, %v483
    %485 = vdwg.mxu0
    %v486 = vmul.f32 %v231, 0.5
    %v487 = vmul.f32 %v233, 0.5
    %v488 = vmul.f32 %v392, 0.5
    %v489 = vmul.f32 %v394, 0.5
    %v490 = vmul.f32 %v237, 0.5
    %v491 = vmul.f32 %v239, 0.5
    %v492 = vmul.f32 %v398, 0.5
    %v493 = vmul.f32 %v400, 0.5
    %v494 = vmul.f32 %v243, 0.5
    %v495 = vmul.f32 %v245, 0.5
    %v496 = vmul.f32 %v404, 0.5
    %v497 = vmul.f32 %v406, 0.5
    %v498 = vmul.f32 %v249, 0.5
    %v499 = vmul.f32 %v251, 0.5
    %v500 = vmul.f32 %v410, 0.5
    %v501 = vmul.f32 %v412, 0.5
    %v502 = vmul.f32 %v255, 0.5
    %v503 = vmul.f32 %v257, 0.5
    %v504 = vmul.f32 %v416, 0.5
    %v505 = vmul.f32 %v418, 0.5
    %v506 = vmul.f32 %v261, 0.5
    %v507 = vmul.f32 %v263, 0.5
    %v508 = vmul.f32 %v422, 0.5
    %v509 = vmul.f32 %v424, 0.5
    %v510 = vmul.f32 %v267, 0.5
    %v511 = vmul.f32 %v269, 0.5
    %v512 = vmul.f32 %v428, 0.5
    %v513 = vmul.f32 %v430, 0.5
    %v514 = vmul.f32 %v273, 0.5
    %v515 = vmul.f32 %v275, 0.5
    %v516 = vmul.f32 %v434, 0.5
    %v517 = vmul.f32 %v436, 0.5
    %v518 = vmul.f32 %v279, 0.5
    %v519 = vmul.f32 %v281, 0.5
    %v520 = vmul.f32 %v440, 0.5
    %v521 = vmul.f32 %v442, 0.5
    %v522 = vmul.f32 %v285, 0.5
    %v523 = vmul.f32 %v287, 0.5
    %v524 = vmul.f32 %v446, 0.5
    %v525 = vmul.f32 %v448, 0.5
    %v526 = vmul.f32 %v291, 0.5
    %v527 = vmul.f32 %v293, 0.5
    %v528 = vmul.f32 %v452, 0.5
    %v529 = vmul.f32 %v454, 0.5
    %v530 = vmul.f32 %v297, 0.5
    %v531 = vmul.f32 %v299, 0.5
    %v532 = vmul.f32 %v458, 0.5
    %v533 = vmul.f32 %v460, 0.5
    %v534 = vmul.f32 %v303, 0.5
    %v535 = vmul.f32 %v305, 0.5
    %v536 = vmul.f32 %v464, 0.5
    %v537 = vmul.f32 %v466, 0.5
    %v538 = vmul.f32 %v309, 0.5
    %v539 = vmul.f32 %v311, 0.5
    %v540 = vmul.f32 %v470, 0.5
    %v541 = vmul.f32 %v472, 0.5
    %v542 = vmul.f32 %v315, 0.5
    %v543 = vmul.f32 %v317, 0.5
    %v544 = vmul.f32 %v476, 0.5
    %v545 = vmul.f32 %v478, 0.5
    %v546 = vmul.f32 %v321, 0.5
    %v547 = vmul.f32 %v323, 0.5
    %v548 = vmul.f32 %v482, 0.5
    %v549 = vmul.f32 %v484, 0.5
    %v550 = vmul.f32 %v231, 0.70710677
    %v551 = vmul.f32 %v233, 0.70710677
    %v552 = vmul.f32 %v392, 0.70710677
    %v553 = vmul.f32 %v394, 0.70710677
    %v554 = vmul.f32 %v237, 0.70710677
    %v555 = vmul.f32 %v239, 0.70710677
    %v556 = vmul.f32 %v398, 0.70710677
    %v557 = vmul.f32 %v400, 0.70710677
    %v558 = vmul.f32 %v243, 0.70710677
    %v559 = vmul.f32 %v245, 0.70710677
    %v560 = vmul.f32 %v404, 0.70710677
    %v561 = vmul.f32 %v406, 0.70710677
    %v562 = vmul.f32 %v249, 0.70710677
    %v563 = vmul.f32 %v251, 0.70710677
    %v564 = vmul.f32 %v410, 0.70710677
    %v565 = vmul.f32 %v412, 0.70710677
    %v566 = vmul.f32 %v255, 0.70710677
    %v567 = vmul.f32 %v257, 0.70710677
    %v568 = vmul.f32 %v416, 0.70710677
    %v569 = vmul.f32 %v418, 0.70710677
    %v570 = vmul.f32 %v261, 0.70710677
    %v571 = vmul.f32 %v263, 0.70710677
    %v572 = vmul.f32 %v422, 0.70710677
    %v573 = vmul.f32 %v424, 0.70710677
    %v574 = vmul.f32 %v267, 0.70710677
    %v575 = vmul.f32 %v269, 0.70710677
    %v576 = vmul.f32 %v428, 0.70710677
    %v577 = vmul.f32 %v430, 0.70710677
    %v578 = vmul.f32 %v273, 0.70710677
    %v579 = vmul.f32 %v275, 0.70710677
    %v580 = vmul.f32 %v434, 0.70710677
    %v581 = vmul.f32 %v436, 0.70710677
    %v582 = vmul.f32 %v279, 0.70710677
    %v583 = vmul.f32 %v281, 0.70710677
    %v584 = vmul.f32 %v440, 0.70710677
    %v585 = vmul.f32 %v442, 0.70710677
    %v586 = vmul.f32 %v285, 0.70710677
    %v587 = vmul.f32 %v287, 0.70710677
    %v588 = vmul.f32 %v446, 0.70710677
    %v589 = vmul.f32 %v448, 0.70710677
    %v590 = vmul.f32 %v291, 0.70710677
    %v591 = vmul.f32 %v293, 0.70710677
    %v592 = vmul.f32 %v452, 0.70710677
    %v593 = vmul.f32 %v454, 0.70710677
    %v594 = vmul.f32 %v297, 0.70710677
    %v595 = vmul.f32 %v299, 0.70710677
    %v596 = vmul.f32 %v458, 0.70710677
    %v597 = vmul.f32 %v460, 0.70710677
    %v598 = vmul.f32 %v303, 0.70710677
    %v599 = vmul.f32 %v305, 0.70710677
    %v600 = vmul.f32 %v464, 0.70710677
    %v601 = vmul.f32 %v466, 0.70710677
    %v602 = vmul.f32 %v309, 0.70710677
    %v603 = vmul.f32 %v311, 0.70710677
    %v604 = vmul.f32 %v470, 0.70710677
    %v605 = vmul.f32 %v472, 0.70710677
    %v606 = vmul.f32 %v315, 0.70710677
    %v607 = vmul.f32 %v317, 0.70710677
    %v608 = vmul.f32 %v476, 0.70710677
    %v609 = vmul.f32 %v478, 0.70710677
    %v610 = vmul.f32 %v321, 0.70710677
    %v611 = vmul.f32 %v323, 0.70710677
    %v612 = vmul.f32 %v482, 0.70710677
    %v613 = vmul.f32 %v484, 0.70710677
    %v614 = verf.f32.pop %v550
    %v615 = verf.f32.pop %v551
    %v616 = verf.f32.pop %v552
    %v617 = verf.f32.pop %v553
    %v618 = verf.f32.pop %v554
    %v619 = verf.f32.pop %v555
    %v620 = verf.f32.pop %v556
    %v621 = verf.f32.pop %v557
    %v622 = verf.f32.pop %v558
    %v623 = verf.f32.pop %v559
    %v624 = verf.f32.pop %v560
    %v625 = verf.f32.pop %v561
    %v626 = verf.f32.pop %v562
    %v627 = verf.f32.pop %v563
    %v628 = verf.f32.pop %v564
    %v629 = verf.f32.pop %v565
    %v630 = verf.f32.pop %v566
    %v631 = verf.f32.pop %v567
    %v632 = verf.f32.pop %v568
    %v633 = verf.f32.pop %v569
    %v634 = verf.f32.pop %v570
    %v635 = verf.f32.pop %v571
    %v636 = verf.f32.pop %v572
    %v637 = verf.f32.pop %v573
    %v638 = verf.f32.pop %v574
    %v639 = verf.f32.pop %v575
    %v640 = verf.f32.pop %v576
    %v641 = verf.f32.pop %v577
    %v642 = verf.f32.pop %v578
    %v643 = verf.f32.pop %v579
    %v644 = verf.f32.pop %v580
    %v645 = verf.f32.pop %v581
    %v646 = verf.f32.pop %v582
    %v647 = verf.f32.pop %v583
    %v648 = verf.f32.pop %v584
    %v649 = verf.f32.pop %v585
    %v650 = verf.f32.pop %v586
    %v651 = verf.f32.pop %v587
    %v652 = verf.f32.pop %v588
    %v653 = verf.f32.pop %v589
    %v654 = verf.f32.pop %v590
    %v655 = verf.f32.pop %v591
    %v656 = verf.f32.pop %v592
    %v657 = verf.f32.pop %v593
    %v658 = verf.f32.pop %v594
    %v659 = verf.f32.pop %v595
    %v660 = verf.f32.pop %v596
    %v661 = verf.f32.pop %v597
    %v662 = verf.f32.pop %v598
    %v663 = verf.f32.pop %v599
    %v664 = verf.f32.pop %v600
    %v665 = verf.f32.pop %v601
    %v666 = verf.f32.pop %v602
    %v667 = verf.f32.pop %v603
    %v668 = verf.f32.pop %v604
    %v669 = verf.f32.pop %v605
    %v670 = verf.f32.pop %v606
    %v671 = verf.f32.pop %v607
    %v672 = verf.f32.pop %v608
    %v673 = verf.f32.pop %v609
    %v674 = verf.f32.pop %v610
    %v675 = verf.f32.pop %v611
    %v676 = verf.f32.pop %v612
    %v677 = verf.f32.pop %v613
    %v678 = vadd.f32 %v614, 1.0
    %v679 = vadd.f32 %v615, 1.0
    %v680 = vadd.f32 %v616, 1.0
    %v681 = vadd.f32 %v617, 1.0
    %v682 = vadd.f32 %v618, 1.0
    %v683 = vadd.f32 %v619, 1.0
    %v684 = vadd.f32 %v620, 1.0
    %v685 = vadd.f32 %v621, 1.0
    %v686 = vadd.f32 %v622, 1.0
    %v687 = vadd.f32 %v623, 1.0
    %v688 = vadd.f32 %v624, 1.0
    %v689 = vadd.f32 %v625, 1.0
    %v690 = vadd.f32 %v626, 1.0
    %v691 = vadd.f32 %v627, 1.0
    %v692 = vadd.f32 %v628, 1.0
    %v693 = vadd.f32 %v629, 1.0
    %v694 = vadd.f32 %v630, 1.0
    %v695 = vadd.f32 %v631, 1.0
    %v696 = vadd.f32 %v632, 1.0
    %v697 = vadd.f32 %v633, 1.0
    %v698 = vadd.f32 %v634, 1.0
    %v699 = vadd.f32 %v635, 1.0
    %v700 = vadd.f32 %v636, 1.0
    %v701 = vadd.f32 %v637, 1.0
    %v702 = vadd.f32 %v638, 1.0
    %v703 = vadd.f32 %v639, 1.0
    %v704 = vadd.f32 %v640, 1.0
    %v705 = vadd.f32 %v641, 1.0
    %v706 = vadd.f32 %v642, 1.0
    %v707 = vadd.f32 %v643, 1.0
    %v708 = vadd.f32 %v644, 1.0
    %v709 = vadd.f32 %v645, 1.0
    %v710 = vadd.f32 %v646, 1.0
    %v711 = vadd.f32 %v647, 1.0
    %v712 = vadd.f32 %v648, 1.0
    %v713 = vadd.f32 %v649, 1.0
    %v714 = vadd.f32 %v650, 1.0
    %v715 = vadd.f32 %v651, 1.0
    %v716 = vadd.f32 %v652, 1.0
    %v717 = vadd.f32 %v653, 1.0
    %v718 = vadd.f32 %v654, 1.0
    %v719 = vadd.f32 %v655, 1.0
    %v720 = vadd.f32 %v656, 1.0
    %v721 = vadd.f32 %v657, 1.0
    %v722 = vadd.f32 %v658, 1.0
    %v723 = vadd.f32 %v659, 1.0
    %v724 = vadd.f32 %v660, 1.0
    %v725 = vadd.f32 %v661, 1.0
    %v726 = vadd.f32 %v662, 1.0
    %v727 = vadd.f32 %v663, 1.0
    %v728 = vadd.f32 %v664, 1.0
    %v729 = vadd.f32 %v665, 1.0
    %v730 = vadd.f32 %v666, 1.0
    %v731 = vadd.f32 %v667, 1.0
    %v732 = vadd.f32 %v668, 1.0
    %v733 = vadd.f32 %v669, 1.0
    %v734 = vadd.f32 %v670, 1.0
    %v735 = vadd.f32 %v671, 1.0
    %v736 = vadd.f32 %v672, 1.0
    %v737 = vadd.f32 %v673, 1.0
    %v738 = vadd.f32 %v674, 1.0
    %v739 = vadd.f32 %v675, 1.0
    %v740 = vadd.f32 %v676, 1.0
    %v741 = vadd.f32 %v677, 1.0
    %v742 = vmul.f32 %v486, %v678
    %v743 = vmul.f32 %v487, %v679
    %v744 = vmul.f32 %v488, %v680
    %v745 = vmul.f32 %v489, %v681
    %v746 = vmul.f32 %v490, %v682
    %v747 = vmul.f32 %v491, %v683
    %v748 = vmul.f32 %v492, %v684
    %v749 = vmul.f32 %v493, %v685
    %v750 = vmul.f32 %v494, %v686
    %v751 = vmul.f32 %v495, %v687
    %v752 = vmul.f32 %v496, %v688
    %v753 = vmul.f32 %v497, %v689
    %v754 = vmul.f32 %v498, %v690
    %v755 = vmul.f32 %v499, %v691
    %v756 = vmul.f32 %v500, %v692
    %v757 = vmul.f32 %v501, %v693
    %v758 = vmul.f32 %v502, %v694
    %v759 = vmul.f32 %v503, %v695
    %v760 = vmul.f32 %v504, %v696
    %v761 = vmul.f32 %v505, %v697
    %v762 = vmul.f32 %v506, %v698
    %v763 = vmul.f32 %v507, %v699
    %v764 = vmul.f32 %v508, %v700
    %v765 = vmul.f32 %v509, %v701
    %v766 = vmul.f32 %v510, %v702
    %v767 = vmul.f32 %v511, %v703
    %v768 = vmul.f32 %v512, %v704
    %v769 = vmul.f32 %v513, %v705
    %v770 = vmul.f32 %v514, %v706
    %v771 = vmul.f32 %v515, %v707
    %v772 = vmul.f32 %v516, %v708
    %v773 = vmul.f32 %v517, %v709
    %v774 = vmul.f32 %v518, %v710
    %v775 = vmul.f32 %v519, %v711
    %v776 = vmul.f32 %v520, %v712
    %v777 = vmul.f32 %v521, %v713
    %v778 = vmul.f32 %v522, %v714
    %v779 = vmul.f32 %v523, %v715
    %v780 = vmul.f32 %v524, %v716
    %v781 = vmul.f32 %v525, %v717
    %v782 = vmul.f32 %v526, %v718
    %v783 = vmul.f32 %v527, %v719
    %v784 = vmul.f32 %v528, %v720
    %v785 = vmul.f32 %v529, %v721
    %v786 = vmul.f32 %v530, %v722
    %v787 = vmul.f32 %v531, %v723
    %v788 = vmul.f32 %v532, %v724
    %v789 = vmul.f32 %v533, %v725
    %v790 = vmul.f32 %v534, %v726
    %v791 = vmul.f32 %v535, %v727
    %v792 = vmul.f32 %v536, %v728
    %v793 = vmul.f32 %v537, %v729
    %v794 = vmul.f32 %v538, %v730
    %v795 = vmul.f32 %v539, %v731
    %v796 = vmul.f32 %v540, %v732
    %v797 = vmul.f32 %v541, %v733
    %v798 = vmul.f32 %v542, %v734
    %v799 = vmul.f32 %v543, %v735
    %v800 = vmul.f32 %v544, %v736
    %v801 = vmul.f32 %v545, %v737
    %v802 = vmul.f32 %v546, %v738
    %v803 = vmul.f32 %v547, %v739
    %v804 = vmul.f32 %v548, %v740
    %v805 = vmul.f32 %v549, %v741
    %v806 = vld [vmem:[#allocation7] sm:$0xff]
    %v807 = vld [vmem:[#allocation7 + $0x8] sm:$0xff]
    %v808 = vld [vmem:[#allocation7 + $0x10] sm:$0xff]
    %v809 = vld [vmem:[#allocation7 + $0x18] sm:$0xff]
    %v810 = vld [vmem:[#allocation7 + $0x20] sm:$0xff]
    %v811 = vld [vmem:[#allocation7 + $0x28] sm:$0xff]
    %v812 = vld [vmem:[#allocation7 + $0x30] sm:$0xff]
    %v813 = vld [vmem:[#allocation7 + $0x38] sm:$0xff]
    %v814 = vld [vmem:[#allocation7 + $0x40] sm:$0xff]
    %v815 = vld [vmem:[#allocation7 + $0x48] sm:$0xff]
    %v816 = vld [vmem:[#allocation7 + $0x50] sm:$0xff]
    %v817 = vld [vmem:[#allocation7 + $0x58] sm:$0xff]
    %v818 = vld [vmem:[#allocation7 + $0x60] sm:$0xff]
    %v819 = vld [vmem:[#allocation7 + $0x68] sm:$0xff]
    %v820 = vld [vmem:[#allocation7 + $0x70] sm:$0xff]
    %v821 = vld [vmem:[#allocation7 + $0x78] sm:$0xff]
    %v822 = vld [vmem:[#allocation7 + $0x80] sm:$0xff]
    %v823 = vld [vmem:[#allocation7 + $0x88] sm:$0xff]
    %v824 = vld [vmem:[#allocation7 + $0x90] sm:$0xff]
    %v825 = vld [vmem:[#allocation7 + $0x98] sm:$0xff]
    %v826 = vld [vmem:[#allocation7 + $0xa0] sm:$0xff]
    %v827 = vld [vmem:[#allocation7 + $0xa8] sm:$0xff]
    %v828 = vld [vmem:[#allocation7 + $0xb0] sm:$0xff]
    %v829 = vld [vmem:[#allocation7 + $0xb8] sm:$0xff]
    %v830 = vld [vmem:[#allocation7 + $0xc0] sm:$0xff]
    %v831 = vld [vmem:[#allocation7 + $0xc8] sm:$0xff]
    %v832 = vld [vmem:[#allocation7 + $0xd0] sm:$0xff]
    %v833 = vld [vmem:[#allocation7 + $0xd8] sm:$0xff]
    %v834 = vld [vmem:[#allocation7 + $0xe0] sm:$0xff]
    %v835 = vld [vmem:[#allocation7 + $0xe8] sm:$0xff]
    %v836 = vld [vmem:[#allocation7 + $0xf0] sm:$0xff]
    %v837 = vld [vmem:[#allocation7 + $0xf8] sm:$0xff]
    %v838 = vld [vmem:[#allocation7 + $0x100] sm:$0xff]
    %v839 = vld [vmem:[#allocation7 + $0x108] sm:$0xff]
    %v840 = vld [vmem:[#allocation7 + $0x110] sm:$0xff]
    %v841 = vld [vmem:[#allocation7 + $0x118] sm:$0xff]
    %v842 = vld [vmem:[#allocation7 + $0x120] sm:$0xff]
    %v843 = vld [vmem:[#allocation7 + $0x128] sm:$0xff]
    %v844 = vld [vmem:[#allocation7 + $0x130] sm:$0xff]
    %v845 = vld [vmem:[#allocation7 + $0x138] sm:$0xff]
    %v846 = vld [vmem:[#allocation7 + $0x140] sm:$0xff]
    %v847 = vld [vmem:[#allocation7 + $0x148] sm:$0xff]
    %v848 = vld [vmem:[#allocation7 + $0x150] sm:$0xff]
    %v849 = vld [vmem:[#allocation7 + $0x158] sm:$0xff]
    %v850 = vld [vmem:[#allocation7 + $0x160] sm:$0xff]
    %v851 = vld [vmem:[#allocation7 + $0x168] sm:$0xff]
    %v852 = vld [vmem:[#allocation7 + $0x170] sm:$0xff]
    %v853 = vld [vmem:[#allocation7 + $0x178] sm:$0xff]
    %v854 = vld [vmem:[#allocation7 + $0x180] sm:$0xff]
    %v855 = vld [vmem:[#allocation7 + $0x188] sm:$0xff]
    %v856 = vld [vmem:[#allocation7 + $0x190] sm:$0xff]
    %v857 = vld [vmem:[#allocation7 + $0x198] sm:$0xff]
    %v858 = vld [vmem:[#allocation7 + $0x1a0] sm:$0xff]
    %v859 = vld [vmem:[#allocation7 + $0x1a8] sm:$0xff]
    %v860 = vld [vmem:[#allocation7 + $0x1b0] sm:$0xff]
    %v861 = vld [vmem:[#allocation7 + $0x1b8] sm:$0xff]
    %v862 = vld [vmem:[#allocation7 + $0x1c0] sm:$0xff]
    %v863 = vld [vmem:[#allocation7 + $0x1c8] sm:$0xff]
    %v864 = vld [vmem:[#allocation7 + $0x1d0] sm:$0xff]
    %v865 = vld [vmem:[#allocation7 + $0x1d8] sm:$0xff]
    %v866 = vld [vmem:[#allocation7 + $0x1e0] sm:$0xff]
    %v867 = vld [vmem:[#allocation7 + $0x1e8] sm:$0xff]
    %v868 = vld [vmem:[#allocation7 + $0x1f0] sm:$0xff]
    %v869 = vld [vmem:[#allocation7 + $0x1f8] sm:$0xff]
    %v870 = vld [vmem:[%s4] sm:$0x1]
    %v872 = vlaneseq
    %v873 = vshrl.u32 %v872, 7
    %v874 = vsub.s32 0, %v873
    %v875 = vrot.slane %v870, %v874
    %877 = vmatprep.subr.mxu0 0.0
    %878 = vmatpush1.msra.mxu0 %v806
    %879 = vmatprep.subr.mxu0 0.0
    %880 = vmatpush1.msra.mxu0 %v807
    %881 = vmatprep.subr.mxu0 0.0
    %882 = vmatpush1.msra.mxu0 %v808
    %883 = vmatprep.subr.mxu0 0.0
    %884 = vmatpush1.msra.mxu0 %v809
    %885 = vmatprep.subr.mxu0 0.0
    %886 = vmatpush1.msra.mxu0 %v810
    %887 = vmatprep.subr.mxu0 0.0
    %888 = vmatpush1.msra.mxu0 %v811
    %889 = vmatprep.subr.mxu0 0.0
    %890 = vmatpush1.msra.mxu0 %v812
    %891 = vmatprep.subr.mxu0 0.0
    %892 = vmatpush1.msra.mxu0 %v813
    %893 = vmatprep.subr.mxu0 0.0
    %894 = vmatpush1.msra.mxu0 %v814
    %895 = vmatprep.subr.mxu0 0.0
    %896 = vmatpush1.msra.mxu0 %v815
    %897 = vmatprep.subr.mxu0 0.0
    %898 = vmatpush1.msra.mxu0 %v816
    %899 = vmatprep.subr.mxu0 0.0
    %900 = vmatpush1.msra.mxu0 %v817
    %901 = vmatprep.subr.mxu0 0.0
    %902 = vmatpush1.msra.mxu0 %v818
    %903 = vmatprep.subr.mxu0 0.0
    %904 = vmatpush1.msra.mxu0 %v819
    %905 = vmatprep.subr.mxu0 0.0
    %906 = vmatpush1.msra.mxu0 %v820
    %907 = vmatprep.subr.mxu0 0.0
    %908 = vmatpush1.msra.mxu0 %v821
    %909 = vmatprep.subr.mxu0 0.0
    %910 = vmatpush1.msra.mxu0 %v822
    %911 = vmatprep.subr.mxu0 0.0
    %912 = vmatpush1.msra.mxu0 %v823
    %913 = vmatprep.subr.mxu0 0.0
    %914 = vmatpush1.msra.mxu0 %v824
    %915 = vmatprep.subr.mxu0 0.0
    %916 = vmatpush1.msra.mxu0 %v825
    %917 = vmatprep.subr.mxu0 0.0
    %918 = vmatpush1.msra.mxu0 %v826
    %919 = vmatprep.subr.mxu0 0.0
    %920 = vmatpush1.msra.mxu0 %v827
    %921 = vmatprep.subr.mxu0 0.0
    %922 = vmatpush1.msra.mxu0 %v828
    %923 = vmatprep.subr.mxu0 0.0
    %924 = vmatpush1.msra.mxu0 %v829
    %925 = vmatprep.subr.mxu0 0.0
    %926 = vmatpush1.msra.mxu0 %v830
    %927 = vmatprep.subr.mxu0 0.0
    %928 = vmatpush1.msra.mxu0 %v831
    %929 = vmatprep.subr.mxu0 0.0
    %930 = vmatpush1.msra.mxu0 %v832
    %931 = vmatprep.subr.mxu0 0.0
    %932 = vmatpush1.msra.mxu0 %v833
    %933 = vmatprep.subr.mxu0 0.0
    %934 = vmatpush1.msra.mxu0 %v834
    %935 = vmatprep.subr.mxu0 0.0
    %936 = vmatpush1.msra.mxu0 %v835
    %937 = vmatprep.subr.mxu0 0.0
    %938 = vmatpush1.msra.mxu0 %v836
    %939 = vmatprep.subr.mxu0 0.0
    %940 = vmatpush1.msra.mxu0 %v837
    %941 = vmatprep.mubr.f32.mxu0 %v743
    %942 = vmatmul.mubr.f32.gmra.mrb[0].mxu0 %v742
    %v943 = vpop.f32.mrb[0].mxu0
    %v944 = vadd.f32 %v875, %v943
    %v945 = vpop.f32.mrb[0].mxu0
    %946 = vmatprep.mubr.f32.mxu0 %v747
    %947 = vmatmul.mubr.f32.gmra.mrb[0].mxu0 %v746
    %v948 = vpop.f32.mrb[0].mxu0
    %v949 = vadd.f32 %v875, %v948
    %v950 = vpop.f32.mrb[0].mxu0
    %951 = vmatprep.mubr.f32.mxu0 %v751
    %952 = vmatmul.mubr.f32.gmra.mrb[0].mxu0 %v750
    %v953 = vpop.f32.mrb[0].mxu0
    %v954 = vadd.f32 %v875, %v953
    %v955 = vpop.f32.mrb[0].mxu0
    %956 = vmatprep.mubr.f32.mxu0 %v755
    %957 = vmatmul.mubr.f32.gmra.mrb[0].mxu0 %v754
    %v958 = vpop.f32.mrb[0].mxu0
    %v959 = vadd.f32 %v875, %v958
    %v960 = vpop.f32.mrb[0].mxu0
    %961 = vmatprep.mubr.f32.mxu0 %v759
    %962 = vmatmul.mubr.f32.gmra.mrb[0].mxu0 %v758
    %v963 = vpop.f32.mrb[0].mxu0
    %v964 = vadd.f32 %v875, %v963
    %v965 = vpop.f32.mrb[0].mxu0
    %966 = vmatprep.mubr.f32.mxu0 %v763
    %967 = vmatmul.mubr.f32.gmra.mrb[0].mxu0 %v762
    %v968 = vpop.f32.mrb[0].mxu0
    %v969 = vadd.f32 %v875, %v968
    %v970 = vpop.f32.mrb[0].mxu0
    %971 = vmatprep.mubr.f32.mxu0 %v767
    %972 = vmatmul.mubr.f32.gmra.mrb[0].mxu0 %v766
    %v973 = vpop.f32.mrb[0].mxu0
    %v974 = vadd.f32 %v875, %v973
    %v975 = vpop.f32.mrb[0].mxu0
    %976 = vmatprep.mubr.f32.mxu0 %v771
    %977 = vmatmul.mubr.f32.gmra.mrb[0].mxu0 %v770
    %v978 = vpop.f32.mrb[0].mxu0
    %v979 = vadd.f32 %v875, %v978
    %v980 = vpop.f32.mrb[0].mxu0
    %981 = vmatprep.mubr.f32.mxu0 %v775
    %982 = vmatmul.mubr.f32.gmra.mrb[0].mxu0 %v774
    %v983 = vpop.f32.mrb[0].mxu0
    %v984 = vadd.f32 %v875, %v983
    %v985 = vpop.f32.mrb[0].mxu0
    %986 = vmatprep.mubr.f32.mxu0 %v779
    %987 = vmatmul.mubr.f32.gmra.mrb[0].mxu0 %v778
    %v988 = vpop.f32.mrb[0].mxu0
    %v989 = vadd.f32 %v875, %v988
    %v990 = vpop.f32.mrb[0].mxu0
    %991 = vmatprep.mubr.f32.mxu0 %v783
    %992 = vmatmul.mubr.f32.gmra.mrb[0].mxu0 %v782
    %v993 = vpop.f32.mrb[0].mxu0
    %v994 = vadd.f32 %v875, %v993
    %v995 = vpop.f32.mrb[0].mxu0
    %996 = vmatprep.mubr.f32.mxu0 %v787
    %997 = vmatmul.mubr.f32.gmra.mrb[0].mxu0 %v786
    %v998 = vpop.f32.mrb[0].mxu0
    %v999 = vadd.f32 %v875, %v998
    %v1000 = vpop.f32.mrb[0].mxu0
    %1001 = vmatprep.mubr.f32.mxu0 %v791
    %1002 = vmatmul.mubr.f32.gmra.mrb[0].mxu0 %v790
    %v1003 = vpop.f32.mrb[0].mxu0
    %v1004 = vadd.f32 %v875, %v1003
    %v1005 = vpop.f32.mrb[0].mxu0
    %1006 = vmatprep.mubr.f32.mxu0 %v795
    %1007 = vmatmul.mubr.f32.gmra.mrb[0].mxu0 %v794
    %v1008 = vpop.f32.mrb[0].mxu0
    %v1009 = vadd.f32 %v875, %v1008
    %v1010 = vpop.f32.mrb[0].mxu0
    %1011 = vmatprep.mubr.f32.mxu0 %v799
    %1012 = vmatmul.mubr.f32.gmra.mrb[0].mxu0 %v798
    %v1013 = vpop.f32.mrb[0].mxu0
    %v1014 = vadd.f32 %v875, %v1013
    %v1015 = vpop.f32.mrb[0].mxu0
    %1016 = vmatprep.mubr.f32.mxu0 %v803
    %1017 = vmatmul.mubr.f32.gmra.mrb[0].mxu0 %v802
    %v1018 = vpop.f32.mrb[0].mxu0
    %v1019 = vadd.f32 %v875, %v1018
    %v1020 = vpop.f32.mrb[0].mxu0
    %1021 = vdwg.mxu0
    %1022 = vmatprep.subr.mxu0 0.0
    %1023 = vmatpush1.msra.mxu0 %v838
    %1024 = vmatprep.subr.mxu0 0.0
    %1025 = vmatpush1.msra.mxu0 %v839
    %1026 = vmatprep.subr.mxu0 0.0
    %1027 = vmatpush1.msra.mxu0 %v840
    %1028 = vmatprep.subr.mxu0 0.0
    %1029 = vmatpush1.msra.mxu0 %v841
    %1030 = vmatprep.subr.mxu0 0.0
    %1031 = vmatpush1.msra.mxu0 %v842
    %1032 = vmatprep.subr.mxu0 0.0
    %1033 = vmatpush1.msra.mxu0 %v843
    %1034 = vmatprep.subr.mxu0 0.0
    %1035 = vmatpush1.msra.mxu0 %v844
    %1036 = vmatprep.subr.mxu0 0.0
    %1037 = vmatpush1.msra.mxu0 %v845
    %1038 = vmatprep.subr.mxu0 0.0
    %1039 = vmatpush1.msra.mxu0 %v846
    %1040 = vmatprep.subr.mxu0 0.0
    %1041 = vmatpush1.msra.mxu0 %v847
    %1042 = vmatprep.subr.mxu0 0.0
    %1043 = vmatpush1.msra.mxu0 %v848
    %1044 = vmatprep.subr.mxu0 0.0
    %1045 = vmatpush1.msra.mxu0 %v849
    %1046 = vmatprep.subr.mxu0 0.0
    %1047 = vmatpush1.msra.mxu0 %v850
    %1048 = vmatprep.subr.mxu0 0.0
    %1049 = vmatpush1.msra.mxu0 %v851
    %1050 = vmatprep.subr.mxu0 0.0
    %1051 = vmatpush1.msra.mxu0 %v852
    %1052 = vmatprep.subr.mxu0 0.0
    %1053 = vmatpush1.msra.mxu0 %v853
    %1054 = vmatprep.subr.mxu0 0.0
    %1055 = vmatpush1.msra.mxu0 %v854
    %1056 = vmatprep.subr.mxu0 0.0
    %1057 = vmatpush1.msra.mxu0 %v855
    %1058 = vmatprep.subr.mxu0 0.0
    %1059 = vmatpush1.msra.mxu0 %v856
    %1060 = vmatprep.subr.mxu0 0.0
    %1061 = vmatpush1.msra.mxu0 %v857
    %1062 = vmatprep.subr.mxu0 0.0
    %1063 = vmatpush1.msra.mxu0 %v858
    %1064 = vmatprep.subr.mxu0 0.0
    %1065 = vmatpush1.msra.mxu0 %v859
    %1066 = vmatprep.subr.mxu0 0.0
    %1067 = vmatpush1.msra.mxu0 %v860
    %1068 = vmatprep.subr.mxu0 0.0
    %1069 = vmatpush1.msra.mxu0 %v861
    %1070 = vmatprep.subr.mxu0 0.0
    %1071 = vmatpush1.msra.mxu0 %v862
    %1072 = vmatprep.subr.mxu0 0.0
    %1073 = vmatpush1.msra.mxu0 %v863
    %1074 = vmatprep.subr.mxu0 0.0
    %1075 = vmatpush1.msra.mxu0 %v864
    %1076 = vmatprep.subr.mxu0 0.0
    %1077 = vmatpush1.msra.mxu0 %v865
    %1078 = vmatprep.subr.mxu0 0.0
    %1079 = vmatpush1.msra.mxu0 %v866
    %1080 = vmatprep.subr.mxu0 0.0
    %1081 = vmatpush1.msra.mxu0 %v867
    %1082 = vmatprep.subr.mxu0 0.0
    %1083 = vmatpush1.msra.mxu0 %v868
    %1084 = vmatprep.subr.mxu0 0.0
    %1085 = vmatpush1.msra.mxu0 %v869
    %1086 = vmatprep.mubr.f32.mxu0 %v745
    %1087 = vmatmul.mubr.f32.gmra.mrb[0].mxu0 %v744
    %v1088 = vpop.f32.mrb[0].mxu0
    %v1089 = vadd.f32 %v944, %v1088
    %v1090 = vpop.f32.mrb[0].mxu0
    %1091 = vmatprep.mubr.f32.mxu0 %v749
    %1092 = vmatmul.mubr.f32.gmra.mrb[0].mxu0 %v748
    %v1093 = vpop.f32.mrb[0].mxu0
    %v1094 = vadd.f32 %v949, %v1093
    %v1095 = vpop.f32.mrb[0].mxu0
    %1096 = vmatprep.mubr.f32.mxu0 %v753
    %1097 = vmatmul.mubr.f32.gmra.mrb[0].mxu0 %v752
    %v1098 = vpop.f32.mrb[0].mxu0
    %v1099 = vadd.f32 %v954, %v1098
    %v1100 = vpop.f32.mrb[0].mxu0
    %1101 = vmatprep.mubr.f32.mxu0 %v757
    %1102 = vmatmul.mubr.f32.gmra.mrb[0].mxu0 %v756
    %v1103 = vpop.f32.mrb[0].mxu0
    %v1104 = vadd.f32 %v959, %v1103
    %v1105 = vpop.f32.mrb[0].mxu0
    %1106 = vmatprep.mubr.f32.mxu0 %v761
    %1107 = vmatmul.mubr.f32.gmra.mrb[0].mxu0 %v760
    %v1108 = vpop.f32.mrb[0].mxu0
    %v1109 = vadd.f32 %v964, %v1108
    %v1110 = vpop.f32.mrb[0].mxu0
    %1111 = vmatprep.mubr.f32.mxu0 %v765
    %1112 = vmatmul.mubr.f32.gmra.mrb[0].mxu0 %v764
    %v1113 = vpop.f32.mrb[0].mxu0
    %v1114 = vadd.f32 %v969, %v1113
    %v1115 = vpop.f32.mrb[0].mxu0
    %1116 = vmatprep.mubr.f32.mxu0 %v769
    %1117 = vmatmul.mubr.f32.gmra.mrb[0].mxu0 %v768
    %v1118 = vpop.f32.mrb[0].mxu0
    %v1119 = vadd.f32 %v974, %v1118
    %v1120 = vpop.f32.mrb[0].mxu0
    %1121 = vmatprep.mubr.f32.mxu0 %v773
    %1122 = vmatmul.mubr.f32.gmra.mrb[0].mxu0 %v772
    %v1123 = vpop.f32.mrb[0].mxu0
    %v1124 = vadd.f32 %v979, %v1123
    %v1125 = vpop.f32.mrb[0].mxu0
    %1126 = vmatprep.mubr.f32.mxu0 %v777
    %1127 = vmatmul.mubr.f32.gmra.mrb[0].mxu0 %v776
    %v1128 = vpop.f32.mrb[0].mxu0
    %v1129 = vadd.f32 %v984, %v1128
    %v1130 = vpop.f32.mrb[0].mxu0
    %1131 = vmatprep.mubr.f32.mxu0 %v781
    %1132 = vmatmul.mubr.f32.gmra.mrb[0].mxu0 %v780
    %v1133 = vpop.f32.mrb[0].mxu0
    %v1134 = vadd.f32 %v989, %v1133
    %v1135 = vpop.f32.mrb[0].mxu0
    %1136 = vmatprep.mubr.f32.mxu0 %v785
    %1137 = vmatmul.mubr.f32.gmra.mrb[0].mxu0 %v784
    %v1138 = vpop.f32.mrb[0].mxu0
    %v1139 = vadd.f32 %v994, %v1138
    %v1140 = vpop.f32.mrb[0].mxu0
    %1141 = vmatprep.mubr.f32.mxu0 %v789
    %1142 = vmatmul.mubr.f32.gmra.mrb[0].mxu0 %v788
    %v1143 = vpop.f32.mrb[0].mxu0
    %v1144 = vadd.f32 %v999, %v1143
    %v1145 = vpop.f32.mrb[0].mxu0
    %1146 = vmatprep.mubr.f32.mxu0 %v793
    %1147 = vmatmul.mubr.f32.gmra.mrb[0].mxu0 %v792
    %v1148 = vpop.f32.mrb[0].mxu0
    %v1149 = vadd.f32 %v1004, %v1148
    %v1150 = vpop.f32.mrb[0].mxu0
    %1151 = vmatprep.mubr.f32.mxu0 %v797
    %1152 = vmatmul.mubr.f32.gmra.mrb[0].mxu0 %v796
    %v1153 = vpop.f32.mrb[0].mxu0
    %v1154 = vadd.f32 %v1009, %v1153
    %v1155 = vpop.f32.mrb[0].mxu0
    %1156 = vmatprep.mubr.f32.mxu0 %v801
    %1157 = vmatmul.mubr.f32.gmra.mrb[0].mxu0 %v800
    %v1158 = vpop.f32.mrb[0].mxu0
    %v1159 = vadd.f32 %v1014, %v1158
    %v1160 = vpop.f32.mrb[0].mxu0
    %1161 = vmatprep.mubr.f32.mxu0 %v805
    %1162 = vmatmul.mubr.f32.gmra.mrb[0].mxu0 %v804
    %v1163 = vpop.f32.mrb[0].mxu0
    %v1164 = vadd.f32 %v1019, %v1163
    %v1165 = vpop.f32.mrb[0].mxu0
    %1166 = vdwg.mxu0
    %1167 = vst [vmem:[#allocation8] sm:$0xff] %v1089
    %1168 = vst [vmem:[#allocation8 + $0x8] sm:$0xff] %v1094
    %1169 = vst [vmem:[#allocation8 + $0x10] sm:$0xff] %v1099
    %1170 = vst [vmem:[#allocation8 + $0x18] sm:$0xff] %v1104
    %1171 = vst [vmem:[#allocation8 + $0x20] sm:$0xff] %v1109
    %1172 = vst [vmem:[#allocation8 + $0x28] sm:$0xff] %v1114
    %1173 = vst [vmem:[#allocation8 + $0x30] sm:$0xff] %v1119
    %1174 = vst [vmem:[#allocation8 + $0x38] sm:$0xff] %v1124
    %1175 = vst [vmem:[#allocation8 + $0x40] sm:$0xff] %v1129
    %1176 = vst [vmem:[#allocation8 + $0x48] sm:$0xff] %v1134
    %1177 = vst [vmem:[#allocation8 + $0x50] sm:$0xff] %v1139
    %1178 = vst [vmem:[#allocation8 + $0x58] sm:$0xff] %v1144
    %1179 = vst [vmem:[#allocation8 + $0x60] sm:$0xff] %v1149
    %1180 = vst [vmem:[#allocation8 + $0x68] sm:$0xff] %v1154
    %1181 = vst [vmem:[#allocation8 + $0x70] sm:$0xff] %v1159
    %1182 = vst [vmem:[#allocation8 + $0x78] sm:$0xff] %v1164
    // Predicated region
    $region34: #{tpu_custom_call.1} parent=1 // pred_check
      _
    $region35: #{tpu_custom_call.1} parent=1 // pred_check_branch
      %1184 = sbr.rel (0) target = $region37
    $region36: #{tpu_custom_call.1} parent=1 // pred_region
      %s1186 = ssub.s32 2048, 2048
      %1187 = vsyncadd [#allocation4], %s1186
      %s1188 = sshll.u32 [#allocation8], 4
      %s1189 = int_to_ptr.vmem [resolvable:$true] %s1188
      %1194 = dma.vmem_to_hbm [thread:$0]  %s1189, 2048, %s5, [#allocation4], 128, 128, 8
    $region37: #{tpu_custom_call.1} parent=1 // pred_fallthru
      _
    // Predicated region
    $region38: #{tpu_custom_call.1} parent=1 // pred_check
      _
    $region39: #{tpu_custom_call.1} parent=1 // pred_check_branch
      %1196 = sbr.rel (0) target = $region41
    $region40: #{tpu_custom_call.1} parent=1 // pred_region
      %1197 = dma.done [#allocation4], 2048
    $region41: #{tpu_custom_call.1} parent=1 // pred_fallthru
      _
    %1198 = vsyncpa [#allocation3], 1
    %1199 = vsyncpa [#allocation6], 1
    %1200 = vsyncpa [#allocation4], 1

// kernel: tpu_custom_call.1
$region0: #{tpu_custom_call.1}
  #allocation0 [shape = 'u32[]', space=smem, size = 0x4, offset = 0x4, fixed_abs, tag = 'smem constant byte address 0x4 - core index']
  #allocation1 [shape = 'u32[144,128]{1,0:T(1,128)}', space=vmem, size = 0x12000, scoped, tag = 'internal scratch']
  %s0 = inlined_call_operand.hbm [shape: f32[128,128], index: 0, kind: input, shape index: {}]
  %s1 = inlined_call_operand.hbm [shape: f32[128,512], index: 1, kind: input, shape index: {}]
  %s2 = inlined_call_operand.vmem [shape: f32[1,512], index: 2, kind: input, shape index: {}]
  %s3 = inlined_call_operand.hbm [shape: f32[512,128], index: 3, kind: input, shape index: {}]
  %s4 = inlined_call_operand.vmem [shape: f32[1,128], index: 4, kind: input, shape index: {}]
  %s5 = inlined_call_operand.hbm [shape: f32[128,128], index: 5, kind: output, shape index: {}]
  %s6 = sld [smem:[#allocation0]]
  $region42: #{tpu_custom_call.1} parent=0
    _
  %s8 = ssub.s32 1, %s6
  %s9 = scalar_select 0, %s8, %s6
  $region1: #{tpu_custom_call.1} parent=0
    #allocation2 [shape = 'u8[65536]{0}', space=vmem, size = 0x10000, scoped, tag = 'input window, operand 0, single buffered']
    #allocation3 [shape = 's32[1]{0}', space=sflag, size = 0x4, scoped, tag = 'scoped memory for tpu_custom_call.1']
    #allocation4 [shape = 's32[1]{0}', space=sflag, size = 0x4, scoped, tag = 'scoped memory for tpu_custom_call.1']
    #allocation5 [shape = 'u8[262144]{0}', space=vmem, size = 0x40000, scoped, tag = 'input window, operand 1, single buffered']
    #allocation6 [shape = 's32[1]{0}', space=sflag, size = 0x4, scoped, tag = 'scoped memory for tpu_custom_call.1']
    #allocation7 [shape = 'u8[262144]{0}', space=vmem, size = 0x40000, scoped, tag = 'input window, operand 3, single buffered']
    #allocation8 [shape = 'u8[65536]{0}', space=vmem, size = 0x10000, scoped, tag = 'output window, operand 0, single buffered']
    %10 = vsyncpa [#allocation3], 0
    %11 = vsyncpa [#allocation6], 0
    %12 = vsyncpa [#allocation4], 0
    // Predicated region
    $region2: #{tpu_custom_call.1} parent=1 // pred_check
      _
    $region3: #{tpu_custom_call.1} parent=1 // pred_check_branch
      %14 = sbr.rel (0) target = $region5
    $region4: #{tpu_custom_call.1} parent=1 // pred_region
      %s16 = ssub.s32 2048, 2048
      %17 = vsyncadd [#allocation3], %s16
      %s18 = sshll.u32 [#allocation2], 4
      %s19 = int_to_ptr.vmem [resolvable:$true] %s18
      %24 = dma.hbm_to_vmem [thread:$0]  %s0, 2048, %s19, [#allocation3], 128, 128, 8
    $region5: #{tpu_custom_call.1} parent=1 // pred_fallthru
      _
    // Predicated region
    $region6: #{tpu_custom_call.1} parent=1 // pred_check
      _
    $region7: #{tpu_custom_call.1} parent=1 // pred_check_branch
      %26 = sbr.rel (0) target = $region9
    $region8: #{tpu_custom_call.1} parent=1 // pred_region
      %s28 = ssub.s32 8192, 8192
      %29 = vsyncadd [#allocation6], %s28
      %s30 = sshll.u32 [#allocation5], 4
      %s31 = int_to_ptr.vmem [resolvable:$true] %s30
      %36 = dma.hbm_to_vmem [thread:$0]  %s1, 8192, %s31, [#allocation6], 512, 512, 32
    $region9: #{tpu_custom_call.1} parent=1 // pred_fallthru
      _
    // Predicated region
    $region10: #{tpu_custom_call.1} parent=1 // pred_check
      _
    $region11: #{tpu_custom_call.1} parent=1 // pred_check_branch
      %38 = sbr.rel (0) target = $region13
    $region12: #{tpu_custom_call.1} parent=1 // pred_region
      _
    $region13: #{tpu_custom_call.1} parent=1 // pred_fallthru
      _
    // Predicated region
    $region14: #{tpu_custom_call.1} parent=1 // pred_check
      _
    $region15: #{tpu_custom_call.1} parent=1 // pred_check_branch
      %40 = sbr.rel (0) target = $region17
    $region16: #{tpu_custom_call.1} parent=1 // pred_region
      %s42 = ssub.s32 8192, 8192
      %43 = vsyncadd [#allocation6], %s42
      %s44 = sshll.u32 [#allocation7], 4
      %s45 = int_to_ptr.vmem [resolvable:$true] %s44
      %50 = dma.hbm_to_vmem [thread:$0]  %s3, 8192, %s45, [#allocation6], 128, 128, 8
    $region17: #{tpu_custom_call.1} parent=1 // pred_fallthru
      _
    // Predicated region
    $region18: #{tpu_custom_call.1} parent=1 // pred_check
      _
    $region19: #{tpu_custom_call.1} parent=1 // pred_check_branch
      %52 = sbr.rel (0) target = $region21
    $region20: #{tpu_custom_call.1} parent=1 // pred_region
      _
    $region21: #{tpu_custom_call.1} parent=1 // pred_fallthru
      _
    // Predicated region
    $region22: #{tpu_custom_call.1} parent=1 // pred_check
      _
    $region23: #{tpu_custom_call.1} parent=1 // pred_check_branch
      %54 = sbr.rel (0) target = $region25
    $region24: #{tpu_custom_call.1} parent=1 // pred_region
      %55 = dma.done [#allocation3], 2048
    $region25: #{tpu_custom_call.1} parent=1 // pred_fallthru
      _
    // Predicated region
    $region26: #{tpu_custom_call.1} parent=1 // pred_check
      _
    $region27: #{tpu_custom_call.1} parent=1 // pred_check_branch
      %57 = sbr.rel (0) target = $region29
    $region28: #{tpu_custom_call.1} parent=1 // pred_region
      %58 = dma.done [#allocation6], 8192
    $region29: #{tpu_custom_call.1} parent=1 // pred_fallthru
      _
    // Predicated region
    $region30: #{tpu_custom_call.1} parent=1 // pred_check
      _
    $region31: #{tpu_custom_call.1} parent=1 // pred_check_branch
      %60 = sbr.rel (0) target = $region33
    $region32: #{tpu_custom_call.1} parent=1 // pred_region
      %61 = dma.done [#allocation6], 8192
    $region33: #{tpu_custom_call.1} parent=1 // pred_fallthru
      _
    %v62 = vld [vmem:[#allocation2] sm:$0xff]
    %v63 = vld [vmem:[#allocation2 + $0x8] sm:$0xff]
    %v64 = vld [vmem:[#allocation2 + $0x10] sm:$0xff]
    %v65 = vld [vmem:[#allocation2 + $0x18] sm:$0xff]
    %v66 = vld [vmem:[#allocation2 + $0x20] sm:$0xff]
    %v67 = vld [vmem:[#allocation2 + $0x28] sm:$0xff]
    %v68 = vld [vmem:[#allocation2 + $0x30] sm:$0xff]
    %v69 = vld [vmem:[#allocation2 + $0x38] sm:$0xff]
    %v70 = vld [vmem:[#allocation2 + $0x40] sm:$0xff]
    %v71 = vld [vmem:[#allocation2 + $0x48] sm:$0xff]
    %v72 = vld [vmem:[#allocation2 + $0x50] sm:$0xff]
    %v73 = vld [vmem:[#allocation2 + $0x58] sm:$0xff]
    %v74 = vld [vmem:[#allocation2 + $0x60] sm:$0xff]
    %v75 = vld [vmem:[#allocation2 + $0x68] sm:$0xff]
    %v76 = vld [vmem:[#allocation2 + $0x70] sm:$0xff]
    %v77 = vld [vmem:[#allocation2 + $0x78] sm:$0xff]
    %v78 = vld [vmem:[#allocation5] sm:$0xff]
    %v79 = vld [vmem:[#allocation5 + $0x8] sm:$0xff]
    %v80 = vld [vmem:[#allocation5 + $0x10] sm:$0xff]
    %v81 = vld [vmem:[#allocation5 + $0x18] sm:$0xff]
    %v82 = vld [vmem:[#allocation5 + $0x20] sm:$0xff]
    %v83 = vld [vmem:[#allocation5 + $0x28] sm:$0xff]
    %v84 = vld [vmem:[#allocation5 + $0x30] sm:$0xff]
    %v85 = vld [vmem:[#allocation5 + $0x38] sm:$0xff]
    %v86 = vld [vmem:[#allocation5 + $0x40] sm:$0xff]
    %v87 = vld [vmem:[#allocation5 + $0x48] sm:$0xff]
    %v88 = vld [vmem:[#allocation5 + $0x50] sm:$0xff]
    %v89 = vld [vmem:[#allocation5 + $0x58] sm:$0xff]
    %v90 = vld [vmem:[#allocation5 + $0x60] sm:$0xff]
    %v91 = vld [vmem:[#allocation5 + $0x68] sm:$0xff]
    %v92 = vld [vmem:[#allocation5 + $0x70] sm:$0xff]
    %v93 = vld [vmem:[#allocation5 + $0x78] sm:$0xff]
    %v94 = vld [vmem:[#allocation5 + $0x80] sm:$0xff]
    %v95 = vld [vmem:[#allocation5 + $0x88] sm:$0xff]
    %v96 = vld [vmem:[#allocation5 + $0x90] sm:$0xff]
    %v97 = vld [vmem:[#allocation5 + $0x98] sm:$0xff]
    %v98 = vld [vmem:[#allocation5 + $0xa0] sm:$0xff]
    %v99 = vld [vmem:[#allocation5 + $0xa8] sm:$0xff]
    %v100 = vld [vmem:[#allocation5 + $0xb0] sm:$0xff]
    %v101 = vld [vmem:[#allocation5 + $0xb8] sm:$0xff]
    %v102 = vld [vmem:[#allocation5 + $0xc0] sm:$0xff]
    %v103 = vld [vmem:[#allocation5 + $0xc8] sm:$0xff]
    %v104 = vld [vmem:[#allocation5 + $0xd0] sm:$0xff]
    %v105 = vld [vmem:[#allocation5 + $0xd8] sm:$0xff]
    %v106 = vld [vmem:[#allocation5 + $0xe0] sm:$0xff]
    %v107 = vld [vmem:[#allocation5 + $0xe8] sm:$0xff]
    %v108 = vld [vmem:[#allocation5 + $0xf0] sm:$0xff]
    %v109 = vld [vmem:[#allocation5 + $0xf8] sm:$0xff]
    %v110 = vld [vmem:[#allocation5 + $0x100] sm:$0xff]
    %v111 = vld [vmem:[#allocation5 + $0x108] sm:$0xff]
    %v112 = vld [vmem:[#allocation5 + $0x110] sm:$0xff]
    %v113 = vld [vmem:[#allocation5 + $0x118] sm:$0xff]
    %v114 = vld [vmem:[#allocation5 + $0x120] sm:$0xff]
    %v115 = vld [vmem:[#allocation5 + $0x128] sm:$0xff]
    %v116 = vld [vmem:[#allocation5 + $0x130] sm:$0xff]
    %v117 = vld [vmem:[#allocation5 + $0x138] sm:$0xff]
    %v118 = vld [vmem:[#allocation5 + $0x140] sm:$0xff]
    %v119 = vld [vmem:[#allocation5 + $0x148] sm:$0xff]
    %v120 = vld [vmem:[#allocation5 + $0x150] sm:$0xff]
    %v121 = vld [vmem:[#allocation5 + $0x158] sm:$0xff]
    %v122 = vld [vmem:[#allocation5 + $0x160] sm:$0xff]
    %v123 = vld [vmem:[#allocation5 + $0x168] sm:$0xff]
    %v124 = vld [vmem:[#allocation5 + $0x170] sm:$0xff]
    %v125 = vld [vmem:[#allocation5 + $0x178] sm:$0xff]
    %v126 = vld [vmem:[#allocation5 + $0x180] sm:$0xff]
    %v127 = vld [vmem:[#allocation5 + $0x188] sm:$0xff]
    %v128 = vld [vmem:[#allocation5 + $0x190] sm:$0xff]
    %v129 = vld [vmem:[#allocation5 + $0x198] sm:$0xff]
    %v130 = vld [vmem:[#allocation5 + $0x1a0] sm:$0xff]
    %v131 = vld [vmem:[#allocation5 + $0x1a8] sm:$0xff]
    %v132 = vld [vmem:[#allocation5 + $0x1b0] sm:$0xff]
    %v133 = vld [vmem:[#allocation5 + $0x1b8] sm:$0xff]
    %v134 = vld [vmem:[#allocation5 + $0x1c0] sm:$0xff]
    %v135 = vld [vmem:[#allocation5 + $0x1c8] sm:$0xff]
    %v136 = vld [vmem:[#allocation5 + $0x1d0] sm:$0xff]
    %v137 = vld [vmem:[#allocation5 + $0x1d8] sm:$0xff]
    %v138 = vld [vmem:[#allocation5 + $0x1e0] sm:$0xff]
    %v139 = vld [vmem:[#allocation5 + $0x1e8] sm:$0xff]
    %v140 = vld [vmem:[#allocation5 + $0x1f0] sm:$0xff]
    %v141 = vld [vmem:[#allocation5 + $0x1f8] sm:$0xff]
    %v142 = vld [vmem:[%s2] sm:$0xf]
    %v144 = vlaneseq
    %v145 = vshrl.u32 %v144, 7
    %v146 = vsub.s32 0, %v145
    %v147 = vrot.slane %v142, %v146
    %v148 = vlaneseq
    %v149 = vshrl.u32 %v148, 7
    %v150 = vsub.s32 1, %v149
    %v151 = vrot.slane %v142, %v150
    %v152 = vlaneseq
    %v153 = vshrl.u32 %v152, 7
    %v154 = vsub.s32 2, %v153
    %v155 = vrot.slane %v142, %v154
    %v156 = vlaneseq
    %v157 = vshrl.u32 %v156, 7
    %v158 = vsub.s32 3, %v157
    %v159 = vrot.slane %v142, %v158
    %164 = vmatprep.subr.mxu0 %v79
    %165 = vmatpush1.msra.mxu0 %v78
    %166 = vmatprep.subr.mxu0 %v83
    %167 = vmatpush1.msra.mxu0 %v82
    %168 = vmatprep.subr.mxu0 %v87
    %169 = vmatpush1.msra.mxu0 %v86
    %170 = vmatprep.subr.mxu0 %v91
    %171 = vmatpush1.msra.mxu0 %v90
    %172 = vmatprep.subr.mxu0 %v95
    %173 = vmatpush1.msra.mxu0 %v94
    %174 = vmatprep.subr.mxu0 %v99
    %175 = vmatpush1.msra.mxu0 %v98
    %176 = vmatprep.subr.mxu0 %v103
    %177 = vmatpush1.msra.mxu0 %v102
    %178 = vmatprep.subr.mxu0 %v107
    %179 = vmatpush1.msra.mxu0 %v106
    %180 = vmatprep.subr.mxu0 %v111
    %181 = vmatpush1.msra.mxu0 %v110
    %182 = vmatprep.subr.mxu0 %v115
    %183 = vmatpush1.msra.mxu0 %v114
    %184 = vmatprep.subr.mxu0 %v119
    %185 = vmatpush1.msra.mxu0 %v118
    %186 = vmatprep.subr.mxu0 %v123
    %187 = vmatpush1.msra.mxu0 %v122
    %188 = vmatprep.subr.mxu0 %v127
    %189 = vmatpush1.msra.mxu0 %v126
    %190 = vmatprep.subr.mxu0 %v131
    %191 = vmatpush1.msra.mxu0 %v130
    %192 = vmatprep.subr.mxu0 %v135
    %193 = vmatpush1.msra.mxu0 %v134
    %194 = vmatprep.subr.mxu0 %v139
    %195 = vmatpush1.msra.mxu0 %v138
    %196 = vmatprep.subr.mxu0 0.0
    %197 = vmatpush1.msra.mxu0 0.0
    %198 = vmatprep.subr.mxu0 0.0
    %199 = vmatpush1.msra.mxu0 0.0
    %200 = vmatprep.subr.mxu0 0.0
    %201 = vmatpush1.msra.mxu0 0.0
    %202 = vmatprep.subr.mxu0 0.0
    %203 = vmatpush1.msra.mxu0 0.0
    %204 = vmatprep.subr.mxu0 0.0
    %205 = vmatpush1.msra.mxu0 0.0
    %206 = vmatprep.subr.mxu0 0.0
    %207 = vmatpush1.msra.mxu0 0.0
    %208 = vmatprep.subr.mxu0 0.0
    %209 = vmatpush1.msra.mxu0 0.0
    %210 = vmatprep.subr.mxu0 0.0
    %211 = vmatpush1.msra.mxu0 0.0
    %212 = vmatprep.subr.mxu0 0.0
    %213 = vmatpush1.msra.mxu0 0.0
    %214 = vmatprep.subr.mxu0 0.0
    %215 = vmatpush1.msra.mxu0 0.0
    %216 = vmatprep.subr.mxu0 0.0
    %217 = vmatpush1.msra.mxu0 0.0
    %218 = vmatprep.subr.mxu0 0.0
    %219 = vmatpush1.msra.mxu0 0.0
    %220 = vmatprep.subr.mxu0 0.0
    %221 = vmatpush1.msra.mxu0 0.0
    %222 = vmatprep.subr.mxu0 0.0
    %223 = vmatpush1.msra.mxu0 0.0
    %224 = vmatprep.subr.mxu0 0.0
    %225 = vmatpush1.msra.mxu0 0.0
    %226 = vmatprep.subr.mxu0 0.0
    %227 = vmatpush1.msra.mxu0 0.0
    %228 = vmatprep.mubr.f32.mxu0 0.0
    %229 = vmatmul.mubr.f32.gmra.mrb[0].mxu0 %v62
    %v230 = vpop.f32.mrb[0].mxu0
    %v231 = vadd.f32 %v147, %v230
    %v232 = vpop.f32.mrb[0].mxu0
    %v233 = vadd.f32 %v151, %v232
    %234 = vmatprep.mubr.f32.mxu0 0.0
    %235 = vmatmul.mubr.f32.gmra.mrb[0].mxu0 %v63
    %v236 = vpop.f32.mrb[0].mxu0
    %v237 = vadd.f32 %v147, %v236
    %v238 = vpop.f32.mrb[0].mxu0
    %v239 = vadd.f32 %v151, %v238
    %240 = vmatprep.mubr.f32.mxu0 0.0
    %241 = vmatmul.mubr.f32.gmra.mrb[0].mxu0 %v64
    %v242 = vpop.f32.mrb[0].mxu0
    %v243 = vadd.f32 %v147, %v242
    %v244 = vpop.f32.mrb[0].mxu0
    %v245 = vadd.f32 %v151, %v244
    %246 = vmatprep.mubr.f32.mxu0 0.0
    %247 = vmatmul.mubr.f32.gmra.mrb[0].mxu0 %v65
    %v248 = vpop.f32.mrb[0].mxu0
    %v249 = vadd.f32 %v147, %v248
    %v250 = vpop.f32.mrb[0].mxu0
    %v251 = vadd.f32 %v151, %v250
    %252 = vmatprep.mubr.f32.mxu0 0.0
    %253 = vmatmul.mubr.f32.gmra.mrb[0].mxu0 %v66
    %v254 = vpop.f32.mrb[0].mxu0
    %v255 = vadd.f32 %v147, %v254
    %v256 = vpop.f32.mrb[0].mxu0
    %v257 = vadd.f32 %v151, %v256
    %258 = vmatprep.mubr.f32.mxu0 0.0
    %259 = vmatmul.mubr.f32.gmra.mrb[0].mxu0 %v67
    %v260 = vpop.f32.mrb[0].mxu0
    %v261 = vadd.f32 %v147, %v260
    %v262 = vpop.f32.mrb[0].mxu0
    %v263 = vadd.f32 %v151, %v262
    %264 = vmatprep.mubr.f32.mxu0 0.0
    %265 = vmatmul.mubr.f32.gmra.mrb[0].mxu0 %v68
    %v266 = vpop.f32.mrb[0].mxu0
    %v267 = vadd.f32 %v147, %v266
    %v268 = vpop.f32.mrb[0].mxu0
    %v269 = vadd.f32 %v151, %v268
    %270 = vmatprep.mubr.f32.mxu0 0.0
    %271 = vmatmul.mubr.f32.gmra.mrb[0].mxu0 %v69
    %v272 = vpop.f32.mrb[0].mxu0
    %v273 = vadd.f32 %v147, %v272
    %v274 = vpop.f32.mrb[0].mxu0
    %v275 = vadd.f32 %v151, %v274
    %276 = vmatprep.mubr.f32.mxu0 0.0
    %277 = vmatmul.mubr.f32.gmra.mrb[0].mxu0 %v70
    %v278 = vpop.f32.mrb[0].mxu0
    %v279 = vadd.f32 %v147, %v278
    %v280 = vpop.f32.mrb[0].mxu0
    %v281 = vadd.f32 %v151, %v280
    %282 = vmatprep.mubr.f32.mxu0 0.0
    %283 = vmatmul.mubr.f32.gmra.mrb[0].mxu0 %v71
    %v284 = vpop.f32.mrb[0].mxu0
    %v285 = vadd.f32 %v147, %v284
    %v286 = vpop.f32.mrb[0].mxu0
    %v287 = vadd.f32 %v151, %v286
    %288 = vmatprep.mubr.f32.mxu0 0.0
    %289 = vmatmul.mubr.f32.gmra.mrb[0].mxu0 %v72
    %v290 = vpop.f32.mrb[0].mxu0
    %v291 = vadd.f32 %v147, %v290
    %v292 = vpop.f32.mrb[0].mxu0
    %v293 = vadd.f32 %v151, %v292
    %294 = vmatprep.mubr.f32.mxu0 0.0
    %295 = vmatmul.mubr.f32.gmra.mrb[0].mxu0 %v73
    %v296 = vpop.f32.mrb[0].mxu0
    %v297 = vadd.f32 %v147, %v296
    %v298 = vpop.f32.mrb[0].mxu0
    %v299 = vadd.f32 %v151, %v298
    %300 = vmatprep.mubr.f32.mxu0 0.0
    %301 = vmatmul.mubr.f32.gmra.mrb[0].mxu0 %v74
    %v302 = vpop.f32.mrb[0].mxu0
    %v303 = vadd.f32 %v147, %v302
    %v304 = vpop.f32.mrb[0].mxu0
    %v305 = vadd.f32 %v151, %v304
    %306 = vmatprep.mubr.f32.mxu0 0.0
    %307 = vmatmul.mubr.f32.gmra.mrb[0].mxu0 %v75
    %v308 = vpop.f32.mrb[0].mxu0
    %v309 = vadd.f32 %v147, %v308
    %v310 = vpop.f32.mrb[0].mxu0
    %v311 = vadd.f32 %v151, %v310
    %312 = vmatprep.mubr.f32.mxu0 0.0
    %313 = vmatmul.mubr.f32.gmra.mrb[0].mxu0 %v76
    %v314 = vpop.f32.mrb[0].mxu0
    %v315 = vadd.f32 %v147, %v314
    %v316 = vpop.f32.mrb[0].mxu0
    %v317 = vadd.f32 %v151, %v316
    %318 = vmatprep.mubr.f32.mxu0 0.0
    %319 = vmatmul.mubr.f32.gmra.mrb[0].mxu0 %v77
    %v320 = vpop.f32.mrb[0].mxu0
    %v321 = vadd.f32 %v147, %v320
    %v322 = vpop.f32.mrb[0].mxu0
    %v323 = vadd.f32 %v151, %v322
    %324 = vdwg.mxu0
    %325 = vmatprep.subr.mxu0 %v81
    %326 = vmatpush1.msra.mxu0 %v80
    %327 = vmatprep.subr.mxu0 %v85
    %328 = vmatpush1.msra.mxu0 %v84
    %329 = vmatprep.subr.mxu0 %v89
    %330 = vmatpush1.msra.mxu0 %v88
    %331 = vmatprep.subr.mxu0 %v93
    %332 = vmatpush1.msra.mxu0 %v92
    %333 = vmatprep.subr.mxu0 %v97
    %334 = vmatpush1.msra.mxu0 %v96
    %335 = vmatprep.subr.mxu0 %v101
    %336 = vmatpush1.msra.mxu0 %v100
    %337 = vmatprep.subr.mxu0 %v105
    %338 = vmatpush1.msra.mxu0 %v104
    %339 = vmatprep.subr.mxu0 %v109
    %340 = vmatpush1.msra.mxu0 %v108
    %341 = vmatprep.subr.mxu0 %v113
    %342 = vmatpush1.msra.mxu0 %v112
    %343 = vmatprep.subr.mxu0 %v117
    %344 = vmatpush1.msra.mxu0 %v116
    %345 = vmatprep.subr.mxu0 %v121
    %346 = vmatpush1.msra.mxu0 %v120
    %347 = vmatprep.subr.mxu0 %v125
    %348 = vmatpush1.msra.mxu0 %v124
    %349 = vmatprep.subr.mxu0 %v129
    %350 = vmatpush1.msra.mxu0 %v128
    %351 = vmatprep.subr.mxu0 %v133
    %352 = vmatpush1.msra.mxu0 %v132
    %353 = vmatprep.subr.mxu0 %v137
    %354 = vmatpush1.msra.mxu0 %v136
    %355 = vmatprep.subr.mxu0 %v141
    %356 = vmatpush1.msra.mxu0 %v140
    %357 = vmatprep.subr.mxu0 0.0
    %358 = vmatpush1.msra.mxu0 0.0
    %359 = vmatprep.subr.mxu0 0.0
    %360 = vmatpush1.msra.mxu0 0.0
    %361 = vmatprep.subr.mxu0 0.0
    %362 = vmatpush1.msra.mxu0 0.0
    %363 = vmatprep.subr.mxu0 0.0
    %364 = vmatpush1.msra.mxu0 0.0
    %365 = vmatprep.subr.mxu0 0.0
    %366 = vmatpush1.msra.mxu0 0.0
    %367 = vmatprep.subr.mxu0 0.0
    %368 = vmatpush1.msra.mxu0 0.0
    %369 = vmatprep.subr.mxu0 0.0
    %370 = vmatpush1.msra.mxu0 0.0
    %371 = vmatprep.subr.mxu0 0.0
    %372 = vmatpush1.msra.mxu0 0.0
    %373 = vmatprep.subr.mxu0 0.0
    %374 = vmatpush1.msra.mxu0 0.0
    %375 = vmatprep.subr.mxu0 0.0
    %376 = vmatpush1.msra.mxu0 0.0
    %377 = vmatprep.subr.mxu0 0.0
    %378 = vmatpush1.msra.mxu0 0.0
    %379 = vmatprep.subr.mxu0 0.0
    %380 = vmatpush1.msra.mxu0 0.0
    %381 = vmatprep.subr.mxu0 0.0
    %382 = vmatpush1.msra.mxu0 0.0
    %383 = vmatprep.subr.mxu0 0.0
    %384 = vmatpush1.msra.mxu0 0.0
    %385 = vmatprep.subr.mxu0 0.0
    %386 = vmatpush1.msra.mxu0 0.0
    %387 = vmatprep.subr.mxu0 0.0
    %388 = vmatpush1.msra.mxu0 0.0
    %389 = vmatprep.mubr.f32.mxu0 0.0
    %390 = vmatmul.mubr.f32.gmra.mrb[0].mxu0 %v62
    %v391 = vpop.f32.mrb[0].mxu0
    %v392 = vadd.f32 %v155, %v391
    %v393 = vpop.f32.mrb[0].mxu0
    %v394 = vadd.f32 %v159, %v393
    %395 = vmatprep.mubr.f32.mxu0 0.0
    %396 = vmatmul.mubr.f32.gmra.mrb[0].mxu0 %v63
    %v397 = vpop.f32.mrb[0].mxu0
    %v398 = vadd.f32 %v155, %v397
    %v399 = vpop.f32.mrb[0].mxu0
    %v400 = vadd.f32 %v159, %v399
    %401 = vmatprep.mubr.f32.mxu0 0.0
    %402 = vmatmul.mubr.f32.gmra.mrb[0].mxu0 %v64
    %v403 = vpop.f32.mrb[0].mxu0
    %v404 = vadd.f32 %v155, %v403
    %v405 = vpop.f32.mrb[0].mxu0
    %v406 = vadd.f32 %v159, %v405
    %407 = vmatprep.mubr.f32.mxu0 0.0
    %408 = vmatmul.mubr.f32.gmra.mrb[0].mxu0 %v65
    %v409 = vpop.f32.mrb[0].mxu0
    %v410 = vadd.f32 %v155, %v409
    %v411 = vpop.f32.mrb[0].mxu0
    %v412 = vadd.f32 %v159, %v411
    %413 = vmatprep.mubr.f32.mxu0 0.0
    %414 = vmatmul.mubr.f32.gmra.mrb[0].mxu0 %v66
    %v415 = vpop.f32.mrb[0].mxu0
    %v416 = vadd.f32 %v155, %v415
    %v417 = vpop.f32.mrb[0].mxu0
    %v418 = vadd.f32 %v159, %v417
    %419 = vmatprep.mubr.f32.mxu0 0.0
    %420 = vmatmul.mubr.f32.gmra.mrb[0].mxu0 %v67
    %v421 = vpop.f32.mrb[0].mxu0
    %v422 = vadd.f32 %v155, %v421
    %v423 = vpop.f32.mrb[0].mxu0
    %v424 = vadd.f32 %v159, %v423
    %425 = vmatprep.mubr.f32.mxu0 0.0
    %426 = vmatmul.mubr.f32.gmra.mrb[0].mxu0 %v68
    %v427 = vpop.f32.mrb[0].mxu0
    %v428 = vadd.f32 %v155, %v427
    %v429 = vpop.f32.mrb[0].mxu0
    %v430 = vadd.f32 %v159, %v429
    %431 = vmatprep.mubr.f32.mxu0 0.0
    %432 = vmatmul.mubr.f32.gmra.mrb[0].mxu0 %v69
    %v433 = vpop.f32.mrb[0].mxu0
    %v434 = vadd.f32 %v155, %v433
    %v435 = vpop.f32.mrb[0].mxu0
    %v436 = vadd.f32 %v159, %v435
    %437 = vmatprep.mubr.f32.mxu0 0.0
    %438 = vmatmul.mubr.f32.gmra.mrb[0].mxu0 %v70
    %v439 = vpop.f32.mrb[0].mxu0
    %v440 = vadd.f32 %v155, %v439
    %v441 = vpop.f32.mrb[0].mxu0
    %v442 = vadd.f32 %v159, %v441
    %443 = vmatprep.mubr.f32.mxu0 0.0
    %444 = vmatmul.mubr.f32.gmra.mrb[0].mxu0 %v71
    %v445 = vpop.f32.mrb[0].mxu0
    %v446 = vadd.f32 %v155, %v445
    %v447 = vpop.f32.mrb[0].mxu0
    %v448 = vadd.f32 %v159, %v447
    %449 = vmatprep.mubr.f32.mxu0 0.0
    %450 = vmatmul.mubr.f32.gmra.mrb[0].mxu0 %v72
    %v451 = vpop.f32.mrb[0].mxu0
    %v452 = vadd.f32 %v155, %v451
    %v453 = vpop.f32.mrb[0].mxu0
    %v454 = vadd.f32 %v159, %v453
    %455 = vmatprep.mubr.f32.mxu0 0.0
    %456 = vmatmul.mubr.f32.gmra.mrb[0].mxu0 %v73
    %v457 = vpop.f32.mrb[0].mxu0
    %v458 = vadd.f32 %v155, %v457
    %v459 = vpop.f32.mrb[0].mxu0
    %v460 = vadd.f32 %v159, %v459
    %461 = vmatprep.mubr.f32.mxu0 0.0
    %462 = vmatmul.mubr.f32.gmra.mrb[0].mxu0 %v74
    %v463 = vpop.f32.mrb[0].mxu0
    %v464 = vadd.f32 %v155, %v463
    %v465 = vpop.f32.mrb[0].mxu0
    %v466 = vadd.f32 %v159, %v465
    %467 = vmatprep.mubr.f32.mxu0 0.0
    %468 = vmatmul.mubr.f32.gmra.mrb[0].mxu0 %v75
    %v469 = vpop.f32.mrb[0].mxu0
    %v470 = vadd.f32 %v155, %v469
    %v471 = vpop.f32.mrb[0].mxu0
    %v472 = vadd.f32 %v159, %v471
    %473 = vmatprep.mubr.f32.mxu0 0.0
    %474 = vmatmul.mubr.f32.gmra.mrb[0].mxu0 %v76
    %v475 = vpop.f32.mrb[0].mxu0
    %v476 = vadd.f32 %v155, %v475
    %v477 = vpop.f32.mrb[0].mxu0
    %v478 = vadd.f32 %v159, %v477
    %479 = vmatprep.mubr.f32.mxu0 0.0
    %480 = vmatmul.mubr.f32.gmra.mrb[0].mxu0 %v77
    %v481 = vpop.f32.mrb[0].mxu0
    %v482 = vadd.f32 %v155, %v481
    %v483 = vpop.f32.mrb[0].mxu0
    %v484 = vadd.f32 %v159, %v483
    %485 = vdwg.mxu0
    %v486 = vmul.f32 %v231, 0.5
    %v487 = vmul.f32 %v233, 0.5
    %v488 = vmul.f32 %v392, 0.5
    %v489 = vmul.f32 %v394, 0.5
    %v490 = vmul.f32 %v237, 0.5
    %v491 = vmul.f32 %v239, 0.5
    %v492 = vmul.f32 %v398, 0.5
    %v493 = vmul.f32 %v400, 0.5
    %v494 = vmul.f32 %v243, 0.5
    %v495 = vmul.f32 %v245, 0.5
    %v496 = vmul.f32 %v404, 0.5
    %v497 = vmul.f32 %v406, 0.5
    %v498 = vmul.f32 %v249, 0.5
    %v499 = vmul.f32 %v251, 0.5
    %v500 = vmul.f32 %v410, 0.5
    %v501 = vmul.f32 %v412, 0.5
    %v502 = vmul.f32 %v255, 0.5
    %v503 = vmul.f32 %v257, 0.5
    %v504 = vmul.f32 %v416, 0.5
    %v505 = vmul.f32 %v418, 0.5
    %v506 = vmul.f32 %v261, 0.5
    %v507 = vmul.f32 %v263, 0.5
    %v508 = vmul.f32 %v422, 0.5
    %v509 = vmul.f32 %v424, 0.5
    %v510 = vmul.f32 %v267, 0.5
    %v511 = vmul.f32 %v269, 0.5
    %v512 = vmul.f32 %v428, 0.5
    %v513 = vmul.f32 %v430, 0.5
    %v514 = vmul.f32 %v273, 0.5
    %v515 = vmul.f32 %v275, 0.5
    %v516 = vmul.f32 %v434, 0.5
    %v517 = vmul.f32 %v436, 0.5
    %v518 = vmul.f32 %v279, 0.5
    %v519 = vmul.f32 %v281, 0.5
    %v520 = vmul.f32 %v440, 0.5
    %v521 = vmul.f32 %v442, 0.5
    %v522 = vmul.f32 %v285, 0.5
    %v523 = vmul.f32 %v287, 0.5
    %v524 = vmul.f32 %v446, 0.5
    %v525 = vmul.f32 %v448, 0.5
    %v526 = vmul.f32 %v291, 0.5
    %v527 = vmul.f32 %v293, 0.5
    %v528 = vmul.f32 %v452, 0.5
    %v529 = vmul.f32 %v454, 0.5
    %v530 = vmul.f32 %v297, 0.5
    %v531 = vmul.f32 %v299, 0.5
    %v532 = vmul.f32 %v458, 0.5
    %v533 = vmul.f32 %v460, 0.5
    %v534 = vmul.f32 %v303, 0.5
    %v535 = vmul.f32 %v305, 0.5
    %v536 = vmul.f32 %v464, 0.5
    %v537 = vmul.f32 %v466, 0.5
    %v538 = vmul.f32 %v309, 0.5
    %v539 = vmul.f32 %v311, 0.5
    %v540 = vmul.f32 %v470, 0.5
    %v541 = vmul.f32 %v472, 0.5
    %v542 = vmul.f32 %v315, 0.5
    %v543 = vmul.f32 %v317, 0.5
    %v544 = vmul.f32 %v476, 0.5
    %v545 = vmul.f32 %v478, 0.5
    %v546 = vmul.f32 %v321, 0.5
    %v547 = vmul.f32 %v323, 0.5
    %v548 = vmul.f32 %v482, 0.5
    %v549 = vmul.f32 %v484, 0.5
    %v550 = vmul.f32 %v231, 0.70710677
    %v551 = vmul.f32 %v233, 0.70710677
    %v552 = vmul.f32 %v392, 0.70710677
    %v553 = vmul.f32 %v394, 0.70710677
    %v554 = vmul.f32 %v237, 0.70710677
    %v555 = vmul.f32 %v239, 0.70710677
    %v556 = vmul.f32 %v398, 0.70710677
    %v557 = vmul.f32 %v400, 0.70710677
    %v558 = vmul.f32 %v243, 0.70710677
    %v559 = vmul.f32 %v245, 0.70710677
    %v560 = vmul.f32 %v404, 0.70710677
    %v561 = vmul.f32 %v406, 0.70710677
    %v562 = vmul.f32 %v249, 0.70710677
    %v563 = vmul.f32 %v251, 0.70710677
    %v564 = vmul.f32 %v410, 0.70710677
    %v565 = vmul.f32 %v412, 0.70710677
    %v566 = vmul.f32 %v255, 0.70710677
    %v567 = vmul.f32 %v257, 0.70710677
    %v568 = vmul.f32 %v416, 0.70710677
    %v569 = vmul.f32 %v418, 0.70710677
    %v570 = vmul.f32 %v261, 0.70710677
    %v571 = vmul.f32 %v263, 0.70710677
    %v572 = vmul.f32 %v422, 0.70710677
    %v573 = vmul.f32 %v424, 0.70710677
    %v574 = vmul.f32 %v267, 0.70710677
    %v575 = vmul.f32 %v269, 0.70710677
    %v576 = vmul.f32 %v428, 0.70710677
    %v577 = vmul.f32 %v430, 0.70710677
    %v578 = vmul.f32 %v273, 0.70710677
    %v579 = vmul.f32 %v275, 0.70710677
    %v580 = vmul.f32 %v434, 0.70710677
    %v581 = vmul.f32 %v436, 0.70710677
    %v582 = vmul.f32 %v279, 0.70710677
    %v583 = vmul.f32 %v281, 0.70710677
    %v584 = vmul.f32 %v440, 0.70710677
    %v585 = vmul.f32 %v442, 0.70710677
    %v586 = vmul.f32 %v285, 0.70710677
    %v587 = vmul.f32 %v287, 0.70710677
    %v588 = vmul.f32 %v446, 0.70710677
    %v589 = vmul.f32 %v448, 0.70710677
    %v590 = vmul.f32 %v291, 0.70710677
    %v591 = vmul.f32 %v293, 0.70710677
    %v592 = vmul.f32 %v452, 0.70710677
    %v593 = vmul.f32 %v454, 0.70710677
    %v594 = vmul.f32 %v297, 0.70710677
    %v595 = vmul.f32 %v299, 0.70710677
    %v596 = vmul.f32 %v458, 0.70710677
    %v597 = vmul.f32 %v460, 0.70710677
    %v598 = vmul.f32 %v303, 0.70710677
    %v599 = vmul.f32 %v305, 0.70710677
    %v600 = vmul.f32 %v464, 0.70710677
    %v601 = vmul.f32 %v466, 0.70710677
    %v602 = vmul.f32 %v309, 0.70710677
    %v603 = vmul.f32 %v311, 0.70710677
    %v604 = vmul.f32 %v470, 0.70710677
    %v605 = vmul.f32 %v472, 0.70710677
    %v606 = vmul.f32 %v315, 0.70710677
    %v607 = vmul.f32 %v317, 0.70710677
    %v608 = vmul.f32 %v476, 0.70710677
    %v609 = vmul.f32 %v478, 0.70710677
    %v610 = vmul.f32 %v321, 0.70710677
    %v611 = vmul.f32 %v323, 0.70710677
    %v612 = vmul.f32 %v482, 0.70710677
    %v613 = vmul.f32 %v484, 0.70710677
    %v614 = verf.f32.pop %v550
    %v615 = verf.f32.pop %v551
    %v616 = verf.f32.pop %v552
    %v617 = verf.f32.pop %v553
    %v618 = verf.f32.pop %v554
    %v619 = verf.f32.pop %v555
    %v620 = verf.f32.pop %v556
    %v621 = verf.f32.pop %v557
    %v622 = verf.f32.pop %v558
    %v623 = verf.f32.pop %v559
    %v624 = verf.f32.pop %v560
    %v625 = verf.f32.pop %v561
    %v626 = verf.f32.pop %v562
    %v627 = verf.f32.pop %v563
    %v628 = verf.f32.pop %v564
    %v629 = verf.f32.pop %v565
    %v630 = verf.f32.pop %v566
    %v631 = verf.f32.pop %v567
    %v632 = verf.f32.pop %v568
    %v633 = verf.f32.pop %v569
    %v634 = verf.f32.pop %v570
    %v635 = verf.f32.pop %v571
    %v636 = verf.f32.pop %v572
    %v637 = verf.f32.pop %v573
    %v638 = verf.f32.pop %v574
    %v639 = verf.f32.pop %v575
    %v640 = verf.f32.pop %v576
    %v641 = verf.f32.pop %v577
    %v642 = verf.f32.pop %v578
    %v643 = verf.f32.pop %v579
    %v644 = verf.f32.pop %v580
    %v645 = verf.f32.pop %v581
    %v646 = verf.f32.pop %v582
    %v647 = verf.f32.pop %v583
    %v648 = verf.f32.pop %v584
    %v649 = verf.f32.pop %v585
    %v650 = verf.f32.pop %v586
    %v651 = verf.f32.pop %v587
    %v652 = verf.f32.pop %v588
    %v653 = verf.f32.pop %v589
    %v654 = verf.f32.pop %v590
    %v655 = verf.f32.pop %v591
    %v656 = verf.f32.pop %v592
    %v657 = verf.f32.pop %v593
    %v658 = verf.f32.pop %v594
    %v659 = verf.f32.pop %v595
    %v660 = verf.f32.pop %v596
    %v661 = verf.f32.pop %v597
    %v662 = verf.f32.pop %v598
    %v663 = verf.f32.pop %v599
    %v664 = verf.f32.pop %v600
    %v665 = verf.f32.pop %v601
    %v666 = verf.f32.pop %v602
    %v667 = verf.f32.pop %v603
    %v668 = verf.f32.pop %v604
    %v669 = verf.f32.pop %v605
    %v670 = verf.f32.pop %v606
    %v671 = verf.f32.pop %v607
    %v672 = verf.f32.pop %v608
    %v673 = verf.f32.pop %v609
    %v674 = verf.f32.pop %v610
    %v675 = verf.f32.pop %v611
    %v676 = verf.f32.pop %v612
    %v677 = verf.f32.pop %v613
    %v678 = vadd.f32 %v614, 1.0
    %v679 = vadd.f32 %v615, 1.0
    %v680 = vadd.f32 %v616, 1.0
    %v681 = vadd.f32 %v617, 1.0
    %v682 = vadd.f32 %v618, 1.0
    %v683 = vadd.f32 %v619, 1.0
    %v684 = vadd.f32 %v620, 1.0
    %v685 = vadd.f32 %v621, 1.0
    %v686 = vadd.f32 %v622, 1.0
    %v687 = vadd.f32 %v623, 1.0
    %v688 = vadd.f32 %v624, 1.0
    %v689 = vadd.f32 %v625, 1.0
    %v690 = vadd.f32 %v626, 1.0
    %v691 = vadd.f32 %v627, 1.0
    %v692 = vadd.f32 %v628, 1.0
    %v693 = vadd.f32 %v629, 1.0
    %v694 = vadd.f32 %v630, 1.0
    %v695 = vadd.f32 %v631, 1.0
    %v696 = vadd.f32 %v632, 1.0
    %v697 = vadd.f32 %v633, 1.0
    %v698 = vadd.f32 %v634, 1.0
    %v699 = vadd.f32 %v635, 1.0
    %v700 = vadd.f32 %v636, 1.0
    %v701 = vadd.f32 %v637, 1.0
    %v702 = vadd.f32 %v638, 1.0
    %v703 = vadd.f32 %v639, 1.0
    %v704 = vadd.f32 %v640, 1.0
    %v705 = vadd.f32 %v641, 1.0
    %v706 = vadd.f32 %v642, 1.0
    %v707 = vadd.f32 %v643, 1.0
    %v708 = vadd.f32 %v644, 1.0
    %v709 = vadd.f32 %v645, 1.0
    %v710 = vadd.f32 %v646, 1.0
    %v711 = vadd.f32 %v647, 1.0
    %v712 = vadd.f32 %v648, 1.0
    %v713 = vadd.f32 %v649, 1.0
    %v714 = vadd.f32 %v650, 1.0
    %v715 = vadd.f32 %v651, 1.0
    %v716 = vadd.f32 %v652, 1.0
    %v717 = vadd.f32 %v653, 1.0
    %v718 = vadd.f32 %v654, 1.0
    %v719 = vadd.f32 %v655, 1.0
    %v720 = vadd.f32 %v656, 1.0
    %v721 = vadd.f32 %v657, 1.0
    %v722 = vadd.f32 %v658, 1.0
    %v723 = vadd.f32 %v659, 1.0
    %v724 = vadd.f32 %v660, 1.0
    %v725 = vadd.f32 %v661, 1.0
    %v726 = vadd.f32 %v662, 1.0
    %v727 = vadd.f32 %v663, 1.0
    %v728 = vadd.f32 %v664, 1.0
    %v729 = vadd.f32 %v665, 1.0
    %v730 = vadd.f32 %v666, 1.0
    %v731 = vadd.f32 %v667, 1.0
    %v732 = vadd.f32 %v668, 1.0
    %v733 = vadd.f32 %v669, 1.0
    %v734 = vadd.f32 %v670, 1.0
    %v735 = vadd.f32 %v671, 1.0
    %v736 = vadd.f32 %v672, 1.0
    %v737 = vadd.f32 %v673, 1.0
    %v738 = vadd.f32 %v674, 1.0
    %v739 = vadd.f32 %v675, 1.0
    %v740 = vadd.f32 %v676, 1.0
    %v741 = vadd.f32 %v677, 1.0
    %v742 = vmul.f32 %v486, %v678
    %v743 = vmul.f32 %v487, %v679
    %v744 = vmul.f32 %v488, %v680
    %v745 = vmul.f32 %v489, %v681
    %v746 = vmul.f32 %v490, %v682
    %v747 = vmul.f32 %v491, %v683
    %v748 = vmul.f32 %v492, %v684
    %v749 = vmul.f32 %v493, %v685
    %v750 = vmul.f32 %v494, %v686
    %v751 = vmul.f32 %v495, %v687
    %v752 = vmul.f32 %v496, %v688
    %v753 = vmul.f32 %v497, %v689
    %v754 = vmul.f32 %v498, %v690
    %v755 = vmul.f32 %v499, %v691
    %v756 = vmul.f32 %v500, %v692
    %v757 = vmul.f32 %v501, %v693
    %v758 = vmul.f32 %v502, %v694
    %v759 = vmul.f32 %v503, %v695
    %v760 = vmul.f32 %v504, %v696
    %v761 = vmul.f32 %v505, %v697
    %v762 = vmul.f32 %v506, %v698
    %v763 = vmul.f32 %v507, %v699
    %v764 = vmul.f32 %v508, %v700
    %v765 = vmul.f32 %v509, %v701
    %v766 = vmul.f32 %v510, %v702
    %v767 = vmul.f32 %v511, %v703
    %v768 = vmul.f32 %v512, %v704
    %v769 = vmul.f32 %v513, %v705
    %v770 = vmul.f32 %v514, %v706
    %v771 = vmul.f32 %v515, %v707
    %v772 = vmul.f32 %v516, %v708
    %v773 = vmul.f32 %v517, %v709
    %v774 = vmul.f32 %v518, %v710
    %v775 = vmul.f32 %v519, %v711
    %v776 = vmul.f32 %v520, %v712
    %v777 = vmul.f32 %v521, %v713
    %v778 = vmul.f32 %v522, %v714
    %v779 = vmul.f32 %v523, %v715
    %v780 = vmul.f32 %v524, %v716
    %v781 = vmul.f32 %v525, %v717
    %v782 = vmul.f32 %v526, %v718
    %v783 = vmul.f32 %v527, %v719
    %v784 = vmul.f32 %v528, %v720
    %v785 = vmul.f32 %v529, %v721
    %v786 = vmul.f32 %v530, %v722
    %v787 = vmul.f32 %v531, %v723
    %v788 = vmul.f32 %v532, %v724
    %v789 = vmul.f32 %v533, %v725
    %v790 = vmul.f32 %v534, %v726
    %v791 = vmul.f32 %v535, %v727
    %v792 = vmul.f32 %v536, %v728
    %v793 = vmul.f32 %v537, %v729
    %v794 = vmul.f32 %v538, %v730
    %v795 = vmul.f32 %v539, %v731
    %v796 = vmul.f32 %v540, %v732
    %v797 = vmul.f32 %v541, %v733
    %v798 = vmul.f32 %v542, %v734
    %v799 = vmul.f32 %v543, %v735
    %v800 = vmul.f32 %v544, %v736
    %v801 = vmul.f32 %v545, %v737
    %v802 = vmul.f32 %v546, %v738
    %v803 = vmul.f32 %v547, %v739
    %v804 = vmul.f32 %v548, %v740
    %v805 = vmul.f32 %v549, %v741
    %v806 = vld [vmem:[#allocation7] sm:$0xff]
    %v807 = vld [vmem:[#allocation7 + $0x8] sm:$0xff]
    %v808 = vld [vmem:[#allocation7 + $0x10] sm:$0xff]
    %v809 = vld [vmem:[#allocation7 + $0x18] sm:$0xff]
    %v810 = vld [vmem:[#allocation7 + $0x20] sm:$0xff]
    %v811 = vld [vmem:[#allocation7 + $0x28] sm:$0xff]
    %v812 = vld [vmem:[#allocation7 + $0x30] sm:$0xff]
    %v813 = vld [vmem:[#allocation7 + $0x38] sm:$0xff]
    %v814 = vld [vmem:[#allocation7 + $0x40] sm:$0xff]
    %v815 = vld [vmem:[#allocation7 + $0x48] sm:$0xff]
    %v816 = vld [vmem:[#allocation7 + $0x50] sm:$0xff]
    %v817 = vld [vmem:[#allocation7 + $0x58] sm:$0xff]
    %v818 = vld [vmem:[#allocation7 + $0x60] sm:$0xff]
    %v819 = vld [vmem:[#allocation7 + $0x68] sm:$0xff]
    %v820 = vld [vmem:[#allocation7 + $0x70] sm:$0xff]
    %v821 = vld [vmem:[#allocation7 + $0x78] sm:$0xff]
    %v822 = vld [vmem:[#allocation7 + $0x80] sm:$0xff]
    %v823 = vld [vmem:[#allocation7 + $0x88] sm:$0xff]
    %v824 = vld [vmem:[#allocation7 + $0x90] sm:$0xff]
    %v825 = vld [vmem:[#allocation7 + $0x98] sm:$0xff]
    %v826 = vld [vmem:[#allocation7 + $0xa0] sm:$0xff]
    %v827 = vld [vmem:[#allocation7 + $0xa8] sm:$0xff]
    %v828 = vld [vmem:[#allocation7 + $0xb0] sm:$0xff]
    %v829 = vld [vmem:[#allocation7 + $0xb8] sm:$0xff]
    %v830 = vld [vmem:[#allocation7 + $0xc0] sm:$0xff]
    %v831 = vld [vmem:[#allocation7 + $0xc8] sm:$0xff]
    %v832 = vld [vmem:[#allocation7 + $0xd0] sm:$0xff]
    %v833 = vld [vmem:[#allocation7 + $0xd8] sm:$0xff]
    %v834 = vld [vmem:[#allocation7 + $0xe0] sm:$0xff]
    %v835 = vld [vmem:[#allocation7 + $0xe8] sm:$0xff]
    %v836 = vld [vmem:[#allocation7 + $0xf0] sm:$0xff]
    %v837 = vld [vmem:[#allocation7 + $0xf8] sm:$0xff]
    %v838 = vld [vmem:[#allocation7 + $0x100] sm:$0xff]
    %v839 = vld [vmem:[#allocation7 + $0x108] sm:$0xff]
    %v840 = vld [vmem:[#allocation7 + $0x110] sm:$0xff]
    %v841 = vld [vmem:[#allocation7 + $0x118] sm:$0xff]
    %v842 = vld [vmem:[#allocation7 + $0x120] sm:$0xff]
    %v843 = vld [vmem:[#allocation7 + $0x128] sm:$0xff]
    %v844 = vld [vmem:[#allocation7 + $0x130] sm:$0xff]
    %v845 = vld [vmem:[#allocation7 + $0x138] sm:$0xff]
    %v846 = vld [vmem:[#allocation7 + $0x140] sm:$0xff]
    %v847 = vld [vmem:[#allocation7 + $0x148] sm:$0xff]
    %v848 = vld [vmem:[#allocation7 + $0x150] sm:$0xff]
    %v849 = vld [vmem:[#allocation7 + $0x158] sm:$0xff]
    %v850 = vld [vmem:[#allocation7 + $0x160] sm:$0xff]
    %v851 = vld [vmem:[#allocation7 + $0x168] sm:$0xff]
    %v852 = vld [vmem:[#allocation7 + $0x170] sm:$0xff]
    %v853 = vld [vmem:[#allocation7 + $0x178] sm:$0xff]
    %v854 = vld [vmem:[#allocation7 + $0x180] sm:$0xff]
    %v855 = vld [vmem:[#allocation7 + $0x188] sm:$0xff]
    %v856 = vld [vmem:[#allocation7 + $0x190] sm:$0xff]
    %v857 = vld [vmem:[#allocation7 + $0x198] sm:$0xff]
    %v858 = vld [vmem:[#allocation7 + $0x1a0] sm:$0xff]
    %v859 = vld [vmem:[#allocation7 + $0x1a8] sm:$0xff]
    %v860 = vld [vmem:[#allocation7 + $0x1b0] sm:$0xff]
    %v861 = vld [vmem:[#allocation7 + $0x1b8] sm:$0xff]
    %v862 = vld [vmem:[#allocation7 + $0x1c0] sm:$0xff]
    %v863 = vld [vmem:[#allocation7 + $0x1c8] sm:$0xff]
    %v864 = vld [vmem:[#allocation7 + $0x1d0] sm:$0xff]
    %v865 = vld [vmem:[#allocation7 + $0x1d8] sm:$0xff]
    %v866 = vld [vmem:[#allocation7 + $0x1e0] sm:$0xff]
    %v867 = vld [vmem:[#allocation7 + $0x1e8] sm:$0xff]
    %v868 = vld [vmem:[#allocation7 + $0x1f0] sm:$0xff]
    %v869 = vld [vmem:[#allocation7 + $0x1f8] sm:$0xff]
    %v870 = vld [vmem:[%s4] sm:$0x1]
    %v872 = vlaneseq
    %v873 = vshrl.u32 %v872, 7
    %v874 = vsub.s32 0, %v873
    %v875 = vrot.slane %v870, %v874
    %877 = vmatprep.subr.mxu0 0.0
    %878 = vmatpush1.msra.mxu0 %v806
    %879 = vmatprep.subr.mxu0 0.0
    %880 = vmatpush1.msra.mxu0 %v807
    %881 = vmatprep.subr.mxu0 0.0
    %882 = vmatpush1.msra.mxu0 %v808
    %883 = vmatprep.subr.mxu0 0.0
    %884 = vmatpush1.msra.mxu0 %v809
    %885 = vmatprep.subr.mxu0 0.0
    %886 = vmatpush1.msra.mxu0 %v810
    %887 = vmatprep.subr.mxu0 0.0
    %888 = vmatpush1.msra.mxu0 %v811
    %889 = vmatprep.subr.mxu0 0.0
    %890 = vmatpush1.msra.mxu0 %v812
    %891 = vmatprep.subr.mxu0 0.0
    %892 = vmatpush1.msra.mxu0 %v813
    %893 = vmatprep.subr.mxu0 0.0
    %894 = vmatpush1.msra.mxu0 %v814
    %895 = vmatprep.subr.mxu0 0.0
    %896 = vmatpush1.msra.mxu0 %v815
    %897 = vmatprep.subr.mxu0 0.0
    %898 = vmatpush1.msra.mxu0 %v816
    %899 = vmatprep.subr.mxu0 0.0
    %900 = vmatpush1.msra.mxu0 %v817
    %901 = vmatprep.subr.mxu0 0.0
    %902 = vmatpush1.msra.mxu0 %v818
    %903 = vmatprep.subr.mxu0 0.0
    %904 = vmatpush1.msra.mxu0 %v819
    %905 = vmatprep.subr.mxu0 0.0
    %906 = vmatpush1.msra.mxu0 %v820
    %907 = vmatprep.subr.mxu0 0.0
    %908 = vmatpush1.msra.mxu0 %v821
    %909 = vmatprep.subr.mxu0 0.0
    %910 = vmatpush1.msra.mxu0 %v822
    %911 = vmatprep.subr.mxu0 0.0
    %912 = vmatpush1.msra.mxu0 %v823
    %913 = vmatprep.subr.mxu0 0.0
    %914 = vmatpush1.msra.mxu0 %v824
    %915 = vmatprep.subr.mxu0 0.0
    %916 = vmatpush1.msra.mxu0 %v825
    %917 = vmatprep.subr.mxu0 0.0
    %918 = vmatpush1.msra.mxu0 %v826
    %919 = vmatprep.subr.mxu0 0.0
    %920 = vmatpush1.msra.mxu0 %v827
    %921 = vmatprep.subr.mxu0 0.0
    %922 = vmatpush1.msra.mxu0 %v828
    %923 = vmatprep.subr.mxu0 0.0
    %924 = vmatpush1.msra.mxu0 %v829
    %925 = vmatprep.subr.mxu0 0.0
    %926 = vmatpush1.msra.mxu0 %v830
    %927 = vmatprep.subr.mxu0 0.0
    %928 = vmatpush1.msra.mxu0 %v831
    %929 = vmatprep.subr.mxu0 0.0
    %930 = vmatpush1.msra.mxu0 %v832
    %931 = vmatprep.subr.mxu0 0.0
    %932 = vmatpush1.msra.mxu0 %v833
    %933 = vmatprep.subr.mxu0 0.0
    %934 = vmatpush1.msra.mxu0 %v834
    %935 = vmatprep.subr.mxu0 0.0
    %936 = vmatpush1.msra.mxu0 %v835
    %937 = vmatprep.subr.mxu0 0.0
    %938 = vmatpush1.msra.mxu0 %v836
    %939 = vmatprep.subr.mxu0 0.0
    %940 = vmatpush1.msra.mxu0 %v837
    %941 = vmatprep.mubr.f32.mxu0 %v743
    %942 = vmatmul.mubr.f32.gmra.mrb[0].mxu0 %v742
    %v943 = vpop.f32.mrb[0].mxu0
    %v944 = vadd.f32 %v875, %v943
    %v945 = vpop.f32.mrb[0].mxu0
    %946 = vmatprep.mubr.f32.mxu0 %v747
    %947 = vmatmul.mubr.f32.gmra.mrb[0].mxu0 %v746
    %v948 = vpop.f32.mrb[0].mxu0
    %v949 = vadd.f32 %v875, %v948
    %v950 = vpop.f32.mrb[0].mxu0
    %951 = vmatprep.mubr.f32.mxu0 %v751
    %952 = vmatmul.mubr.f32.gmra.mrb[0].mxu0 %v750
    %v953 = vpop.f32.mrb[0].mxu0
    %v954 = vadd.f32 %v875, %v953
    %v955 = vpop.f32.mrb[0].mxu0
    %956 = vmatprep.mubr.f32.mxu0 %v755
    %957 = vmatmul.mubr.f32.gmra.mrb[0].mxu0 %v754
    %v958 = vpop.f32.mrb[0].mxu0
    %v959 = vadd.f32 %v875, %v958
    %v960 = vpop.f32.mrb[0].mxu0
    %961 = vmatprep.mubr.f32.mxu0 %v759
    %962 = vmatmul.mubr.f32.gmra.mrb[0].mxu0 %v758
    %v963 = vpop.f32.mrb[0].mxu0
    %v964 = vadd.f32 %v875, %v963
    %v965 = vpop.f32.mrb[0].mxu0
    %966 = vmatprep.mubr.f32.mxu0 %v763
    %967 = vmatmul.mubr.f32.gmra.mrb[0].mxu0 %v762
    %v968 = vpop.f32.mrb[0].mxu0
    %v969 = vadd.f32 %v875, %v968
    %v970 = vpop.f32.mrb[0].mxu0
    %971 = vmatprep.mubr.f32.mxu0 %v767
    %972 = vmatmul.mubr.f32.gmra.mrb[0].mxu0 %v766
    %v973 = vpop.f32.mrb[0].mxu0
    %v974 = vadd.f32 %v875, %v973
    %v975 = vpop.f32.mrb[0].mxu0
    %976 = vmatprep.mubr.f32.mxu0 %v771
    %977 = vmatmul.mubr.f32.gmra.mrb[0].mxu0 %v770
    %v978 = vpop.f32.mrb[0].mxu0
    %v979 = vadd.f32 %v875, %v978
    %v980 = vpop.f32.mrb[0].mxu0
    %981 = vmatprep.mubr.f32.mxu0 %v775
    %982 = vmatmul.mubr.f32.gmra.mrb[0].mxu0 %v774
    %v983 = vpop.f32.mrb[0].mxu0
    %v984 = vadd.f32 %v875, %v983
    %v985 = vpop.f32.mrb[0].mxu0
    %986 = vmatprep.mubr.f32.mxu0 %v779
    %987 = vmatmul.mubr.f32.gmra.mrb[0].mxu0 %v778
    %v988 = vpop.f32.mrb[0].mxu0
    %v989 = vadd.f32 %v875, %v988
    %v990 = vpop.f32.mrb[0].mxu0
    %991 = vmatprep.mubr.f32.mxu0 %v783
    %992 = vmatmul.mubr.f32.gmra.mrb[0].mxu0 %v782
    %v993 = vpop.f32.mrb[0].mxu0
    %v994 = vadd.f32 %v875, %v993
    %v995 = vpop.f32.mrb[0].mxu0
    %996 = vmatprep.mubr.f32.mxu0 %v787
    %997 = vmatmul.mubr.f32.gmra.mrb[0].mxu0 %v786
    %v998 = vpop.f32.mrb[0].mxu0
    %v999 = vadd.f32 %v875, %v998
    %v1000 = vpop.f32.mrb[0].mxu0
    %1001 = vmatprep.mubr.f32.mxu0 %v791
    %1002 = vmatmul.mubr.f32.gmra.mrb[0].mxu0 %v790
    %v1003 = vpop.f32.mrb[0].mxu0
    %v1004 = vadd.f32 %v875, %v1003
    %v1005 = vpop.f32.mrb[0].mxu0
    %1006 = vmatprep.mubr.f32.mxu0 %v795
    %1007 = vmatmul.mubr.f32.gmra.mrb[0].mxu0 %v794
    %v1008 = vpop.f32.mrb[0].mxu0
    %v1009 = vadd.f32 %v875, %v1008
    %v1010 = vpop.f32.mrb[0].mxu0
    %1011 = vmatprep.mubr.f32.mxu0 %v799
    %1012 = vmatmul.mubr.f32.gmra.mrb[0].mxu0 %v798
    %v1013 = vpop.f32.mrb[0].mxu0
    %v1014 = vadd.f32 %v875, %v1013
    %v1015 = vpop.f32.mrb[0].mxu0
    %1016 = vmatprep.mubr.f32.mxu0 %v803
    %1017 = vmatmul.mubr.f32.gmra.mrb[0].mxu0 %v802
    %v1018 = vpop.f32.mrb[0].mxu0
    %v1019 = vadd.f32 %v875, %v1018
    %v1020 = vpop.f32.mrb[0].mxu0
    %1021 = vdwg.mxu0
    %1022 = vmatprep.subr.mxu0 0.0
    %1023 = vmatpush1.msra.mxu0 %v838
    %1024 = vmatprep.subr.mxu0 0.0
    %1025 = vmatpush1.msra.mxu0 %v839
    %1026 = vmatprep.subr.mxu0 0.0
    %1027 = vmatpush1.msra.mxu0 %v840
    %1028 = vmatprep.subr.mxu0 0.0
    %1029 = vmatpush1.msra.mxu0 %v841
    %1030 = vmatprep.subr.mxu0 0.0
    %1031 = vmatpush1.msra.mxu0 %v842
    %1032 = vmatprep.subr.mxu0 0.0
    %1033 = vmatpush1.msra.mxu0 %v843
    %1034 = vmatprep.subr.mxu0 0.0
    %1035 = vmatpush1.msra.mxu0 %v844
    %1036 = vmatprep.subr.mxu0 0.0
    %1037 = vmatpush1.msra.mxu0 %v845
    %1038 = vmatprep.subr.mxu0 0.0
    %1039 = vmatpush1.msra.mxu0 %v846
    %1040 = vmatprep.subr.mxu0 0.0
    %1041 = vmatpush1.msra.mxu0 %v847
    %1042 = vmatprep.subr.mxu0 0.0
    %1043 = vmatpush1.msra.mxu0 %v848
    %1044 = vmatprep.subr.mxu0 0.0
    %1045 = vmatpush1.msra.mxu0 %v849
    %1046 = vmatprep.subr.mxu0 0.0
    %1047 = vmatpush1.msra.mxu0 %v850
    %1048 = vmatprep.subr.mxu0 0.0
    %1049 = vmatpush1.msra.mxu0 %v851
    %1050 = vmatprep.subr.mxu0 0.0
    %1051 = vmatpush1.msra.mxu0 %v852
    %1052 = vmatprep.subr.mxu0 0.0
    %1053 = vmatpush1.msra.mxu0 %v853
    %1054 = vmatprep.subr.mxu0 0.0
    %1055 = vmatpush1.msra.mxu0 %v854
    %1056 = vmatprep.subr.mxu0 0.0
    %1057 = vmatpush1.msra.mxu0 %v855
    %1058 = vmatprep.subr.mxu0 0.0
    %1059 = vmatpush1.msra.mxu0 %v856
    %1060 = vmatprep.subr.mxu0 0.0
    %1061 = vmatpush1.msra.mxu0 %v857
    %1062 = vmatprep.subr.mxu0 0.0
    %1063 = vmatpush1.msra.mxu0 %v858
    %1064 = vmatprep.subr.mxu0 0.0
    %1065 = vmatpush1.msra.mxu0 %v859
    %1066 = vmatprep.subr.mxu0 0.0
    %1067 = vmatpush1.msra.mxu0 %v860
    %1068 = vmatprep.subr.mxu0 0.0
    %1069 = vmatpush1.msra.mxu0 %v861
    %1070 = vmatprep.subr.mxu0 0.0
    %1071 = vmatpush1.msra.mxu0 %v862
    %1072 = vmatprep.subr.mxu0 0.0
    %1073 = vmatpush1.msra.mxu0 %v863
    %1074 = vmatprep.subr.mxu0 0.0
    %1075 = vmatpush1.msra.mxu0 %v864
    %1076 = vmatprep.subr.mxu0 0.0
    %1077 = vmatpush1.msra.mxu0 %v865
    %1078 = vmatprep.subr.mxu0 0.0
    %1079 = vmatpush1.msra.mxu0 %v866
    %1080 = vmatprep.subr.mxu0 0.0
    %1081 = vmatpush1.msra.mxu0 %v867
    %1082 = vmatprep.subr.mxu0 0.0
    %1083 = vmatpush1.msra.mxu0 %v868
    %1084 = vmatprep.subr.mxu0 0.0
    %1085 = vmatpush1.msra.mxu0 %v869
    %1086 = vmatprep.mubr.f32.mxu0 %v745
    %1087 = vmatmul.mubr.f32.gmra.mrb[0].mxu0 %v744
    %v1088 = vpop.f32.mrb[0].mxu0
    %v1089 = vadd.f32 %v944, %v1088
    %v1090 = vpop.f32.mrb[0].mxu0
    %1091 = vmatprep.mubr.f32.mxu0 %v749
    %1092 = vmatmul.mubr.f32.gmra.mrb[0].mxu0 %v748
    %v1093 = vpop.f32.mrb[0].mxu0
    %v1094 = vadd.f32 %v949, %v1093
    %v1095 = vpop.f32.mrb[0].mxu0
    %1096 = vmatprep.mubr.f32.mxu0 %v753
    %1097 = vmatmul.mubr.f32.gmra.mrb[0].mxu0 %v752
    %v1098 = vpop.f32.mrb[0].mxu0
    %v1099 = vadd.f32 %v954, %v1098
    %v1100 = vpop.f32.mrb[0].mxu0
    %1101 = vmatprep.mubr.f32.mxu0 %v757
    %1102 = vmatmul.mubr.f32.gmra.mrb[0].mxu0 %v756
    %v1103 = vpop.f32.mrb[0].mxu0
    %v1104 = vadd.f32 %v959, %v1103
    %v1105 = vpop.f32.mrb[0].mxu0
    %1106 = vmatprep.mubr.f32.mxu0 %v761
    %1107 = vmatmul.mubr.f32.gmra.mrb[0].mxu0 %v760
    %v1108 = vpop.f32.mrb[0].mxu0
    %v1109 = vadd.f32 %v964, %v1108
    %v1110 = vpop.f32.mrb[0].mxu0
    %1111 = vmatprep.mubr.f32.mxu0 %v765
    %1112 = vmatmul.mubr.f32.gmra.mrb[0].mxu0 %v764
    %v1113 = vpop.f32.mrb[0].mxu0
    %v1114 = vadd.f32 %v969, %v1113
    %v1115 = vpop.f32.mrb[0].mxu0
    %1116 = vmatprep.mubr.f32.mxu0 %v769
    %1117 = vmatmul.mubr.f32.gmra.mrb[0].mxu0 %v768
    %v1118 = vpop.f32.mrb[0].mxu0
    %v1119 = vadd.f32 %v974, %v1118
    %v1120 = vpop.f32.mrb[0].mxu0
    %1121 = vmatprep.mubr.f32.mxu0 %v773
    %1122 = vmatmul.mubr.f32.gmra.mrb[0].mxu0 %v772
    %v1123 = vpop.f32.mrb[0].mxu0
    %v1124 = vadd.f32 %v979, %v1123
    %v1125 = vpop.f32.mrb[0].mxu0
    %1126 = vmatprep.mubr.f32.mxu0 %v777
    %1127 = vmatmul.mubr.f32.gmra.mrb[0].mxu0 %v776
    %v1128 = vpop.f32.mrb[0].mxu0
    %v1129 = vadd.f32 %v984, %v1128
    %v1130 = vpop.f32.mrb[0].mxu0
    %1131 = vmatprep.mubr.f32.mxu0 %v781
    %1132 = vmatmul.mubr.f32.gmra.mrb[0].mxu0 %v780
    %v1133 = vpop.f32.mrb[0].mxu0
    %v1134 = vadd.f32 %v989, %v1133
    %v1135 = vpop.f32.mrb[0].mxu0
    %1136 = vmatprep.mubr.f32.mxu0 %v785
    %1137 = vmatmul.mubr.f32.gmra.mrb[0].mxu0 %v784
    %v1138 = vpop.f32.mrb[0].mxu0
    %v1139 = vadd.f32 %v994, %v1138
    %v1140 = vpop.f32.mrb[0].mxu0
    %1141 = vmatprep.mubr.f32.mxu0 %v789
    %1142 = vmatmul.mubr.f32.gmra.mrb[0].mxu0 %v788
    %v1143 = vpop.f32.mrb[0].mxu0
    %v1144 = vadd.f32 %v999, %v1143
    %v1145 = vpop.f32.mrb[0].mxu0
    %1146 = vmatprep.mubr.f32.mxu0 %v793
    %1147 = vmatmul.mubr.f32.gmra.mrb[0].mxu0 %v792
    %v1148 = vpop.f32.mrb[0].mxu0
    %v1149 = vadd.f32 %v1004, %v1148
    %v1150 = vpop.f32.mrb[0].mxu0
    %1151 = vmatprep.mubr.f32.mxu0 %v797
    %1152 = vmatmul.mubr.f32.gmra.mrb[0].mxu0 %v796
    %v1153 = vpop.f32.mrb[0].mxu0
    %v1154 = vadd.f32 %v1009, %v1153
    %v1155 = vpop.f32.mrb[0].mxu0
    %1156 = vmatprep.mubr.f32.mxu0 %v801
    %1157 = vmatmul.mubr.f32.gmra.mrb[0].mxu0 %v800
    %v1158 = vpop.f32.mrb[0].mxu0
    %v1159 = vadd.f32 %v1014, %v1158
    %v1160 = vpop.f32.mrb[0].mxu0
    %1161 = vmatprep.mubr.f32.mxu0 %v805
    %1162 = vmatmul.mubr.f32.gmra.mrb[0].mxu0 %v804
    %v1163 = vpop.f32.mrb[0].mxu0
    %v1164 = vadd.f32 %v1019, %v1163
    %v1165 = vpop.f32.mrb[0].mxu0
    %1166 = vdwg.mxu0
    %1167 = vst [vmem:[#allocation8] sm:$0xff] %v1089
    %1168 = vst [vmem:[#allocation8 + $0x8] sm:$0xff] %v1094
    %1169 = vst [vmem:[#allocation8 + $0x10] sm:$0xff] %v1099
    %1170 = vst [vmem:[#allocation8 + $0x18] sm:$0xff] %v1104
    %1171 = vst [vmem:[#allocation8 + $0x20] sm:$0xff] %v1109
    %1172 = vst [vmem:[#allocation8 + $0x28] sm:$0xff] %v1114
    %1173 = vst [vmem:[#allocation8 + $0x30] sm:$0xff] %v1119
    %1174 = vst [vmem:[#allocation8 + $0x38] sm:$0xff] %v1124
    %1175 = vst [vmem:[#allocation8 + $0x40] sm:$0xff] %v1129
    %1176 = vst [vmem:[#allocation8 + $0x48] sm:$0xff] %v1134
    %1177 = vst [vmem:[#allocation8 + $0x50] sm:$0xff] %v1139
    %1178 = vst [vmem:[#allocation8 + $0x58] sm:$0xff] %v1144
    %1179 = vst [vmem:[#allocation8 + $0x60] sm:$0xff] %v1149
    %1180 = vst [vmem:[#allocation8 + $0x68] sm:$0xff] %v1154
    %1181 = vst [vmem:[#allocation8 + $0x70] sm:$0xff] %v1159
    %1182 = vst [vmem:[#allocation8 + $0x78] sm:$0xff] %v1164
    // Predicated region
    $region34: #{tpu_custom_call.1} parent=1 // pred_check
      _
    $region35: #{tpu_custom_call.1} parent=1 // pred_check_branch
      %1184 = sbr.rel (0) target = $region37
    $region36: #{tpu_custom_call.1} parent=1 // pred_region
      %s1186 = ssub.s32 2048, 2048
      %1187 = vsyncadd [#allocation4], %s1186
      %s1188 = sshll.u32 [#allocation8], 4
      %s1189 = int_to_ptr.vmem [resolvable:$true] %s1188
      %1194 = dma.vmem_to_hbm [thread:$0]  %s1189, 2048, %s5, [#allocation4], 128, 128, 8
    $region37: #{tpu_custom_call.1} parent=1 // pred_fallthru
      _
    // Predicated region
    $region38: #{tpu_custom_call.1} parent=1 // pred_check
      _
    $region39: #{tpu_custom_call.1} parent=1 // pred_check_branch
      %1196 = sbr.rel (0) target = $region41
    $region40: #{tpu_custom_call.1} parent=1 // pred_region
      %1197 = dma.done [#allocation4], 2048
    $region41: #{tpu_custom_call.1} parent=1 // pred_fallthru
      _
    %1198 = vsyncpa [#allocation3], 1
    %1199 = vsyncpa [#allocation6], 1
    %1200 = vsyncpa [#allocation4], 1

</llo_original>
